<compile_context>
chip_gen: v7x
topology: tpu7x:2x2x1
jax: 0.10.0
libtpu: 0.0.40
codegen_flags: <defaults>
</compile_context>

<pallas_src>
import math
import functools

import jax
import jax.numpy as jnp
from jax.experimental import pallas as pl
from jax.experimental.pallas import tpu as pltpu


# ---------------------------- model config ----------------------------

class Config:
    vocab_size = 128
    hidden = 32
    num_heads = 2
    head_dim = 16          # hidden // num_heads
    intermediate = 64
    num_layers = 2
    max_pos = 16
    type_vocab = 2
    num_labels = 5         # stand-in for len(train_dataset.data['field'].unique())
    ln_eps = 1e-12


# ---------------------- fused transformer-stack kernel ----------------------

def _bert_stack_kernel(x_emb_ref, mask_ref, emb_g_ref, emb_b_ref,
                       wqkv_ref, bqkv_ref, wo_ref, bo_ref,
                       ln1g_ref, ln1b_ref, w1_ref, b1_ref,
                       w2_ref, b2_ref, ln2g_ref, ln2b_ref,
                       x_out_ref, x_scr, ctx_scr,
                       *, nh, hd, eps):
    """One grid step = (one batch element, one transformer layer).

    grid = (B, num_layers).  The hidden state lives in VMEM scratch `x_scr`
    across the layer axis; weights arrive as layer-indexed bf16 blocks via
    BlockSpec.  MXU gets bf16 operands / f32 accumulation; elementwise math
    (LayerNorm, GELU, softmax) stays f32.
    """
    H = nh * hd
    layer = pl.program_id(1)

    def layernorm(x, g, b):
        mu = jnp.mean(x, axis=-1, keepdims=True)
        xc = x - mu
        var = jnp.mean(xc * xc, axis=-1, keepdims=True)
        return xc * jax.lax.rsqrt(var + eps) * g + b

    # Embedding LayerNorm fused into layer 0 (per batch element).
    @pl.when(layer == 0)
    def _():
        x_scr[...] = layernorm(x_emb_ref[...], emb_g_ref[...], emb_b_ref[...])

    x = x_scr[...]                                         # (S, H) f32
    mb = mask_ref[...]                                     # (1, S) additive mask

    # Fused QKV projection (1/sqrt(hd) already folded into Wq / bq).
    qkv = jnp.dot(x.astype(jnp.bfloat16), wqkv_ref[...],
                  preferred_element_type=jnp.float32) + bqkv_ref[...]    # (S, 3H)

    # Per-head attention via static lane slices (no transposes, no reshapes).
    for h in range(nh):
        c0 = h * hd
        q = qkv[:, c0:c0 + hd].astype(jnp.bfloat16)
        k = qkv[:, H + c0:H + c0 + hd].astype(jnp.bfloat16)
        v = qkv[:, 2 * H + c0:2 * H + c0 + hd].astype(jnp.bfloat16)
        s = jax.lax.dot_general(q, k, (((1,), (1,)), ((), ())),
                                preferred_element_type=jnp.float32)      # q @ k^T
        s = s + mb
        s = s - jnp.max(s, axis=-1, keepdims=True)
        p = jnp.exp(s)
        p = p * pl.reciprocal(jnp.sum(p, axis=-1, keepdims=True), approx=True)
        ctx_scr[:, c0:c0 + hd] = jnp.dot(p.astype(jnp.bfloat16), v,
                                         preferred_element_type=jnp.float32)

    # Attention output projection + residual + LayerNorm.
    attn = jnp.dot(ctx_scr[...].astype(jnp.bfloat16), wo_ref[...],
                   preferred_element_type=jnp.float32) + bo_ref[...]
    x = layernorm(attn + x, ln1g_ref[...], ln1b_ref[...])

    # Feed-forward (exact erf GELU, same as HF "gelu") + residual + LayerNorm.
    inter = jnp.dot(x.astype(jnp.bfloat16), w1_ref[...],
                    preferred_element_type=jnp.float32) + b1_ref[...]
    inter = 0.5 * inter * (1.0 + jax.lax.erf(inter * (1.0 / math.sqrt(2.0))))
    ffn = jnp.dot(inter.astype(jnp.bfloat16), w2_ref[...],
                  preferred_element_type=jnp.float32) + b2_ref[...]
    x = layernorm(ffn + x, ln2g_ref[...], ln2b_ref[...])

    x_scr[...] = x
    x_out_ref[...] = x     # output block revisited across layers; HBM write once/batch


def _bert_stack(prep, x_emb, add_mask, cfg):
    B, S, H = x_emb.shape
    L, I = cfg.num_layers, cfg.intermediate

    per_batch = lambda b, l: (b, 0, 0)
    per_layer = lambda b, l: (l, 0, 0)
    const2 = lambda b, l: (0, 0)

    in_specs = [
        pl.BlockSpec((None, S, H), per_batch),        # x_emb (pre-LN embedding sum)
        pl.BlockSpec((None, 1, S), per_batch),        # additive attention mask
        pl.BlockSpec((1, H), const2),                 # embedding LN gamma
        pl.BlockSpec((1, H), const2),                 # embedding LN beta
        pl.BlockSpec((None, H, 3 * H), per_layer),    # wqkv  (bf16)
        pl.BlockSpec((None, 1, 3 * H), per_layer),    # bqkv
        pl.BlockSpec((None, H, H), per_layer),        # wo    (bf16)
        pl.BlockSpec((None, 1, H), per_layer),        # bo
        pl.BlockSpec((None, 1, H), per_layer),        # ln1 gamma
        pl.BlockSpec((None, 1, H), per_layer),        # ln1 beta
        pl.BlockSpec((None, H, I), per_layer),        # w1    (bf16)
        pl.BlockSpec((None, 1, I), per_layer),        # b1
        pl.BlockSpec((None, I, H), per_layer),        # w2    (bf16)
        pl.BlockSpec((None, 1, H), per_layer),        # b2
        pl.BlockSpec((None, 1, H), per_layer),        # ln2 gamma
        pl.BlockSpec((None, 1, H), per_layer),        # ln2 beta
    ]

    kernel = functools.partial(_bert_stack_kernel, nh=cfg.num_heads,
                               hd=cfg.head_dim, eps=cfg.ln_eps)

    return pl.pallas_call(
        kernel,
        out_shape=jax.ShapeDtypeStruct((B, S, H), jnp.float32),
        grid_spec=pltpu.PrefetchScalarGridSpec(
            num_scalar_prefetch=0,
            grid=(B, L),                              # batch parallel, layers sequential
            in_specs=in_specs,
            out_specs=pl.BlockSpec((None, S, H), per_batch),
            scratch_shapes=[pltpu.VMEM((S, H), jnp.float32),   # hidden-state carry
                            pltpu.VMEM((S, H), jnp.float32)],  # attention context
        ),
        compiler_params=pltpu.CompilerParams(
            dimension_semantics=("parallel", "arbitrary")),
    )(x_emb, add_mask, prep['emb_ln_g'], prep['emb_ln_b'],
      prep['wqkv'], prep['bqkv'], prep['wo'], prep['bo'],
      prep['ln1_g'], prep['ln1_b'], prep['w1'], prep['b1'],
      prep['w2'], prep['b2'], prep['ln2_g'], prep['ln2_b'])


# -------------------- fused classifier head + cross-entropy --------------------

def _cls_ce_kernel(x_ref, w_ref, b_ref, labels_ref, logits_ref, loss_ref):
    # Token classification head + nn.CrossEntropyLoss(ignore_index=-100), mean.
    logits = jnp.dot(x_ref[...], w_ref[...],
                     preferred_element_type=jnp.float32) + b_ref[...]    # (M, L)
    logits_ref[...] = logits
    labels = labels_ref[...]                                             # (M, 1) int32
    m = jnp.max(logits, axis=-1, keepdims=True)
    lse = jnp.log(jnp.sum(jnp.exp(logits - m), axis=-1, keepdims=True)) + m
    cols = jax.lax.broadcasted_iota(jnp.int32, logits.shape, 1)
    onehot = (cols == labels).astype(jnp.float32)
    picked = jnp.sum(onehot * logits, axis=-1, keepdims=True)
    nll = lse - picked                                                   # (M, 1)
    valid = (labels != -100).astype(jnp.float32)
    total = jnp.sum(nll * valid)
    cnt = jnp.maximum(jnp.sum(valid), 1.0)
    loss_ref[...] = jnp.reshape(total / cnt, (1, 1))


_VMEM = functools.partial(pl.BlockSpec, memory_space=pltpu.MemorySpace.VMEM)


def _classifier_and_loss(prep, x2d, labels2d, num_labels):
    M = x2d.shape[0]
    return pl.pallas_call(
        _cls_ce_kernel,
        out_shape=(jax.ShapeDtypeStruct((M, num_labels), jnp.float32),
                   jax.ShapeDtypeStruct((1, 1), jnp.float32)),
        in_specs=[_VMEM(), _VMEM(), _VMEM(), _VMEM()],
        out_specs=(_VMEM(), _VMEM()),
    )(x2d, prep['cls_w'], prep['cls_b'], labels2d)


# ---------------------------- parameters ----------------------------

def init_params(key, cfg):
    """Deterministic stand-in for the pretrained 'bert-base-uncased' weights."""
    def normal(k, shape):
        return (0.02 * jax.random.normal(k, shape)).astype(jnp.float32)

    keys = iter(jax.random.split(key, 128))
    H, I = cfg.hidden, cfg.intermediate
    params = {
        'word_emb': normal(next(keys), (cfg.vocab_size, H)),
        'pos_emb': normal(next(keys), (cfg.max_pos, H)),
        'type_emb': normal(next(keys), (cfg.type_vocab, H)),
        'emb_ln_g': jnp.ones((H,), jnp.float32),
        'emb_ln_b': jnp.zeros((H,), jnp.float32),
        'cls_w': normal(next(keys), (H, cfg.num_labels)),
        'cls_b': jnp.zeros((cfg.num_labels,), jnp.float32),
        'layers': [],
    }
    for _ in range(cfg.num_layers):
        params['layers'].append({
            'wq': normal(next(keys), (H, H)), 'bq': jnp.zeros((H,), jnp.float32),
            'wk': normal(next(keys), (H, H)), 'bk': jnp.zeros((H,), jnp.float32),
            'wv': normal(next(keys), (H, H)), 'bv': jnp.zeros((H,), jnp.float32),
            'wo': normal(next(keys), (H, H)), 'bo': jnp.zeros((H,), jnp.float32),
            'ln1_g': jnp.ones((H,), jnp.float32), 'ln1_b': jnp.zeros((H,), jnp.float32),
            'w1': normal(next(keys), (H, I)), 'b1': jnp.zeros((I,), jnp.float32),
            'w2': normal(next(keys), (I, H)), 'b2': jnp.zeros((H,), jnp.float32),
            'ln2_g': jnp.ones((H,), jnp.float32), 'ln2_b': jnp.zeros((H,), jnp.float32),
        })
    return params


def prepare_params(params, cfg):
    """One-time packing (hoisted out of the forward pass):
      * concat Wq|Wk|Wv -> (L, H, 3H), fold 1/sqrt(head_dim) into Wq / bq,
      * stack per-layer tensors along a leading layer axis (fed by BlockSpec),
      * cast MXU weights to bf16 (f32 accumulation happens in-kernel),
      * pre-reshape biases / LN params to (L, 1, N) — no per-call reshapes remain.
    """
    H, I = cfg.hidden, cfg.intermediate
    scale = 1.0 / math.sqrt(cfg.head_dim)

    def stack(fn):
        return jnp.stack([fn(l) for l in params['layers']], axis=0)

    return {
        'word_emb': params['word_emb'],
        'pos_emb': params['pos_emb'],
        'type_emb': params['type_emb'],
        'emb_ln_g': params['emb_ln_g'].reshape(1, H),
        'emb_ln_b': params['emb_ln_b'].reshape(1, H),
        'wqkv': stack(lambda l: jnp.concatenate(
            [l['wq'] * scale, l['wk'], l['wv']], axis=1)).astype(jnp.bfloat16),
        'bqkv': stack(lambda l: jnp.concatenate(
            [l['bq'] * scale, l['bk'], l['bv']], axis=0).reshape(1, 3 * H)),
        'wo': stack(lambda l: l['wo']).astype(jnp.bfloat16),
        'bo': stack(lambda l: l['bo'].reshape(1, H)),
        'ln1_g': stack(lambda l: l['ln1_g'].reshape(1, H)),
        'ln1_b': stack(lambda l: l['ln1_b'].reshape(1, H)),
        'w1': stack(lambda l: l['w1']).astype(jnp.bfloat16),
        'b1': stack(lambda l: l['b1'].reshape(1, I)),
        'w2': stack(lambda l: l['w2']).astype(jnp.bfloat16),
        'b2': stack(lambda l: l['b2'].reshape(1, H)),
        'ln2_g': stack(lambda l: l['ln2_g'].reshape(1, H)),
        'ln2_b': stack(lambda l: l['ln2_b'].reshape(1, H)),
        'cls_w': params['cls_w'],
        'cls_b': params['cls_b'].reshape(1, cfg.num_labels),
    }


# ---------------------------- forward pass ----------------------------

def token_classifier_forward(prep, input_ids, attention_mask, labels=None,
                             cfg=Config()):
    B, S = input_ids.shape
    H = cfg.hidden

    # Embedding lookups are plain-JAX glue (gather); the embedding LayerNorm is
    # fused into layer 0 of the stacked kernel.  Dropout = identity (eval mode).
    tok = jnp.take(prep['word_emb'], input_ids, axis=0)              # (B, S, H)
    pos = prep['pos_emb'][:S][None, :, :]
    typ = prep['type_emb'][0][None, None, :]                         # token_type_ids = 0
    x_emb = (tok + pos + typ).astype(jnp.float32)

    # additive mask: 0 keep / -1e9 masked, shaped (B, 1, S)
    add_mask = ((1.0 - attention_mask.astype(jnp.float32)) * -1e9)[:, None, :]

    x = _bert_stack(prep, x_emb, add_mask, cfg)                      # (B, S, H)

    x2d = x.reshape(B * S, H)
    if labels is None:
        labels2d = jnp.full((B * S, 1), -100, jnp.int32)             # loss discarded
    else:
        labels2d = labels.reshape(B * S, 1).astype(jnp.int32)

    logits2d, loss = _classifier_and_loss(prep, x2d, labels2d, cfg.num_labels)
    logits = logits2d.reshape(B, S, cfg.num_labels)

    if labels is None:
        return logits
    return loss[0, 0], logits


# ---------------------------- main ----------------------------

if __name__ == "__main__":
    cfg = Config()
    root = jax.random.PRNGKey(0)
    kparams, kid, klab = jax.random.split(root, 3)

    raw_params = init_params(kparams, cfg)
    prep = prepare_params(raw_params, cfg)   # hoisted one-time packing

    B, S = 2, 8
    input_ids = jax.random.randint(kid, (B, S), 0, cfg.vocab_size, dtype=jnp.int32)
    attention_mask = jnp.ones((B, S), dtype=jnp.int32).at[:, S - 2:].set(0)  # pad last 2
    labels = jax.random.randint(klab, (B, S), 0, cfg.num_labels, dtype=jnp.int32)
    labels = labels.at[:, S - 2:].set(-100)                                  # ignore padding

    fwd = jax.jit(functools.partial(token_classifier_forward, cfg=cfg))
    loss, logits = fwd(prep, input_ids, attention_mask, labels)
    jax.block_until_ready((loss, logits))

    assert logits.shape == (B, S, cfg.num_labels)
    assert loss.shape == ()
    print("KERNEL_OK")
</pallas_src>

<mosaic_0001>
module attributes {stable_mosaic.version = 11 : i64} {
  func.func @_cls_ce_kernel(%arg0: memref<16x32xf32, #tpu.memory_space<vmem>>, %arg1: memref<32x5xf32, #tpu.memory_space<vmem>>, %arg2: memref<1x5xf32, #tpu.memory_space<vmem>>, %arg3: memref<16x1xi32, #tpu.memory_space<vmem>>, %arg4: memref<16x5xf32, #tpu.memory_space<vmem>>, %arg5: memref<1x1xf32, #tpu.memory_space<vmem>>) attributes {dimension_semantics = [], scalar_prefetch = 0 : i64, scratch_operands = 0 : i64, tpu.core_type = #tpu.core_type<tc>} {
    %c0 = arith.constant 0 : index
    %c0_0 = arith.constant 0 : index
    %0 = vector.load %arg0[%c0, %c0_0] : memref<16x32xf32, #tpu.memory_space<vmem>>, vector<16x32xf32>
    %c0_1 = arith.constant 0 : index
    %c0_2 = arith.constant 0 : index
    %1 = vector.load %arg1[%c0_1, %c0_2] : memref<32x5xf32, #tpu.memory_space<vmem>>, vector<32x5xf32>
    %cst = arith.constant dense<0.000000e+00> : vector<16x5xf32>
    %2 = tpu.matmul %0, %1, %cst {dimension_numbers = #tpu.dot_dimension_numbers<[1], [0], [0], [1], [0, 0, 1, 1], [], []>} : vector<16x32xf32>, vector<32x5xf32>, vector<16x5xf32> -> vector<16x5xf32>
    %c0_3 = arith.constant 0 : index
    %c0_4 = arith.constant 0 : index
    %3 = vector.load %arg2[%c0_3, %c0_4] : memref<1x5xf32, #tpu.memory_space<vmem>>, vector<1x5xf32>
    %4 = vector.broadcast %3 : vector<1x5xf32> to vector<16x5xf32>
    %5 = arith.addf %2, %4 : vector<16x5xf32>
    %c0_5 = arith.constant 0 : index
    %c0_6 = arith.constant 0 : index
    %6 = vector.load %arg4[%c0_5, %c0_6] : memref<16x5xf32, #tpu.memory_space<vmem>>, vector<16x5xf32>
    tpu.vector_store %arg4[%c0_5, %c0_6], %5 {strides = array<i32>} : memref<16x5xf32, #tpu.memory_space<vmem>>, vector<16x5xf32>,
    %c0_7 = arith.constant 0 : index
    %c0_8 = arith.constant 0 : index
    %7 = vector.load %arg3[%c0_7, %c0_8] : memref<16x1xi32, #tpu.memory_space<vmem>>, vector<16x1xi32>
    %cst_9 = arith.constant dense<0xFF800000> : vector<16xf32>
    %8 = vector.multi_reduction <maximumf>, %5, %cst_9 [1] : vector<16x5xf32> to vector<16xf32>
    %9 = vector.shape_cast %8 : vector<16xf32> to vector<16x1xf32>
    %10 = vector.broadcast %9 : vector<16x1xf32> to vector<16x5xf32>
    %11 = arith.subf %5, %10 : vector<16x5xf32>
    %12 = math.exp %11 : vector<16x5xf32>
    %cst_10 = arith.constant dense<0.000000e+00> : vector<16xf32>
    %13 = vector.multi_reduction <add>, %12, %cst_10 [1] : vector<16x5xf32> to vector<16xf32>
    %14 = vector.shape_cast %13 : vector<16xf32> to vector<16x1xf32>
    %15 = math.log %14 : vector<16x1xf32>
    %16 = arith.addf %15, %9 : vector<16x1xf32>
    %17 = tpu.iota {dimensions = array<i32: 1>} : vector<16x5xi32>
    %18 = vector.broadcast %7 : vector<16x1xi32> to vector<16x5xi32>
    %19 = arith.cmpi eq, %17, %18 : vector<16x5xi32>
    %20 = arith.extui %19 : vector<16x5xi1> to vector<16x5xi32>
    %21 = arith.sitofp %20 : vector<16x5xi32> to vector<16x5xf32>
    %22 = arith.mulf %21, %5 : vector<16x5xf32>
    %cst_11 = arith.constant dense<0.000000e+00> : vector<16xf32>
    %23 = vector.multi_reduction <add>, %22, %cst_11 [1] : vector<16x5xf32> to vector<16xf32>
    %24 = vector.shape_cast %23 : vector<16xf32> to vector<16x1xf32>
    %25 = arith.subf %16, %24 : vector<16x1xf32>
    %c-100_i32 = arith.constant -100 : i32
    %26 = vector.broadcast %c-100_i32 : i32 to vector<16x1xi32>
    %27 = arith.cmpi ne, %7, %26 : vector<16x1xi32>
    %28 = arith.extui %27 : vector<16x1xi1> to vector<16x1xi32>
    %29 = arith.sitofp %28 : vector<16x1xi32> to vector<16x1xf32>
    %30 = arith.mulf %25, %29 : vector<16x1xf32>
    %31 = vector.shape_cast %30 : vector<16x1xf32> to vector<1x16x1xf32>
    %cst_12 = arith.constant dense<0.000000e+00> : vector<1xf32>
    %32 = vector.multi_reduction <add>, %31, %cst_12 [1, 2] : vector<1x16x1xf32> to vector<1xf32>
    %33 = vector.shape_cast %32 : vector<1xf32> to vector<1x1x1xf32>
    %34 = vector.extract %33[0, 0, 0] : f32 from vector<1x1x1xf32>
    %35 = vector.shape_cast %29 : vector<16x1xf32> to vector<1x16x1xf32>
    %cst_13 = arith.constant dense<0.000000e+00> : vector<1xf32>
    %36 = vector.multi_reduction <add>, %35, %cst_13 [1, 2] : vector<1x16x1xf32> to vector<1xf32>
    %37 = vector.shape_cast %36 : vector<1xf32> to vector<1x1x1xf32>
    %38 = vector.extract %37[0, 0, 0] : f32 from vector<1x1x1xf32>
    %cst_14 = arith.constant 1.000000e+00 : f32
    %39 = arith.maximumf %38, %cst_14 : f32
    %40 = arith.divf %34, %39 : f32
    %41 = vector.broadcast %40 : f32 to vector<1x1xf32>
    %c0_15 = arith.constant 0 : index
    %c0_16 = arith.constant 0 : index
    %42 = vector.load %arg5[%c0_15, %c0_16] : memref<1x1xf32, #tpu.memory_space<vmem>>, vector<1x1xf32>
    tpu.vector_store %arg5[%c0_15, %c0_16], %41 {strides = array<i32>} : memref<1x1xf32, #tpu.memory_space<vmem>>, vector<1x1xf32>,
    return
  }
}

module attributes {stable_mosaic.version = 11 : i64} {
  func.func @_bert_stack_kernel(%arg0: i32, %arg1: i32, %arg2: memref<1x8x32xf32, #tpu.memory_space<vmem>>, %arg3: memref<1x1x8xf32, #tpu.memory_space<vmem>>, %arg4: memref<1x32xf32, #tpu.memory_space<vmem>>, %arg5: memref<1x32xf32, #tpu.memory_space<vmem>>, %arg6: memref<1x32x96xbf16, #tpu.memory_space<vmem>>, %arg7: memref<1x1x96xf32, #tpu.memory_space<vmem>>, %arg8: memref<1x32x32xbf16, #tpu.memory_space<vmem>>, %arg9: memref<1x1x32xf32, #tpu.memory_space<vmem>>, %arg10: memref<1x1x32xf32, #tpu.memory_space<vmem>>, %arg11: memref<1x1x32xf32, #tpu.memory_space<vmem>>, %arg12: memref<1x32x64xbf16, #tpu.memory_space<vmem>>, %arg13: memref<1x1x64xf32, #tpu.memory_space<vmem>>, %arg14: memref<1x64x32xbf16, #tpu.memory_space<vmem>>, %arg15: memref<1x1x32xf32, #tpu.memory_space<vmem>>, %arg16: memref<1x1x32xf32, #tpu.memory_space<vmem>>, %arg17: memref<1x1x32xf32, #tpu.memory_space<vmem>>, %arg18: memref<1x8x32xf32, #tpu.memory_space<vmem>>, %arg19: memref<8x32xf32, #tpu.memory_space<vmem>>, %arg20: memref<8x32xf32, #tpu.memory_space<vmem>>) attributes {dimension_semantics = [#tpu.dimension_semantics<parallel>, #tpu.dimension_semantics<arbitrary>], iteration_bounds = array<i64: 2, 2>, scalar_prefetch = 0 : i64, scratch_operands = 2 : i64, tpu.core_type = #tpu.core_type<tc>, window_params = [{transform_indices = @transform_0, window_bounds = array<i64: 1, 8, 32>}, {transform_indices = @transform_1, window_bounds = array<i64: 1, 1, 8>}, {pipeline_mode = #tpu.pipeline_mode<synchronous>, transform_indices = @transform_2, window_bounds = array<i64: 1, 32>}, {pipeline_mode = #tpu.pipeline_mode<synchronous>, transform_indices = @transform_3, window_bounds = array<i64: 1, 32>}, {transform_indices = @transform_4, window_bounds = array<i64: 1, 32, 96>}, {transform_indices = @transform_5, window_bounds = array<i64: 1, 1, 96>}, {transform_indices = @transform_6, window_bounds = array<i64: 1, 32, 32>}, {transform_indices = @transform_7, window_bounds = array<i64: 1, 1, 32>}, {transform_indices = @transform_8, window_bounds = array<i64: 1, 1, 32>}, {transform_indices = @transform_9, window_bounds = array<i64: 1, 1, 32>}, {transform_indices = @transform_10, window_bounds = array<i64: 1, 32, 64>}, {transform_indices = @transform_11, window_bounds = array<i64: 1, 1, 64>}, {transform_indices = @transform_12, window_bounds = array<i64: 1, 64, 32>}, {transform_indices = @transform_13, window_bounds = array<i64: 1, 1, 32>}, {transform_indices = @transform_14, window_bounds = array<i64: 1, 1, 32>}, {transform_indices = @transform_15, window_bounds = array<i64: 1, 1, 32>}, {transform_indices = @transform_16, window_bounds = array<i64: 1, 8, 32>}]} {
    %c0_i32 = arith.constant 0 : i32
    %0 = arith.cmpi eq, %arg1, %c0_i32 : i32
    %1 = arith.extui %0 : i1 to i32
    %c0_i32_0 = arith.constant 0 : i32
    %2 = arith.cmpi ne, %1, %c0_i32_0 : i32
    scf.if %2 {
      %c0_75 = arith.constant 0 : index
      %c0_76 = arith.constant 0 : index
      %c0_77 = arith.constant 0 : index
      %145 = vector.load %arg2[%c0_75, %c0_76, %c0_77] : memref<1x8x32xf32, #tpu.memory_space<vmem>>, vector<1x8x32xf32>
      %146 = vector.shape_cast %145 : vector<1x8x32xf32> to vector<8x32xf32>
      %c0_78 = arith.constant 0 : index
      %c0_79 = arith.constant 0 : index
      %147 = vector.load %arg4[%c0_78, %c0_79] : memref<1x32xf32, #tpu.memory_space<vmem>>, vector<1x32xf32>
      %c0_80 = arith.constant 0 : index
      %c0_81 = arith.constant 0 : index
      %148 = vector.load %arg5[%c0_80, %c0_81] : memref<1x32xf32, #tpu.memory_space<vmem>>, vector<1x32xf32>
      %cst_82 = arith.constant dense<0.000000e+00> : vector<8xf32>
      %149 = vector.multi_reduction <add>, %146, %cst_82 [1] : vector<8x32xf32> to vector<8xf32>
      %150 = vector.shape_cast %149 : vector<8xf32> to vector<8x1xf32>
      %cst_83 = arith.constant 3.200000e+01 : f32
      %151 = vector.broadcast %cst_83 : f32 to vector<8x1xf32>
      %152 = arith.divf %150, %151 : vector<8x1xf32>
      %153 = vector.broadcast %152 : vector<8x1xf32> to vector<8x32xf32>
      %154 = arith.subf %146, %153 : vector<8x32xf32>
      %155 = arith.mulf %154, %154 : vector<8x32xf32>
      %cst_84 = arith.constant dense<0.000000e+00> : vector<8xf32>
      %156 = vector.multi_reduction <add>, %155, %cst_84 [1] : vector<8x32xf32> to vector<8xf32>
      %157 = vector.shape_cast %156 : vector<8xf32> to vector<8x1xf32>
      %cst_85 = arith.constant 3.200000e+01 : f32
      %158 = vector.broadcast %cst_85 : f32 to vector<8x1xf32>
      %159 = arith.divf %157, %158 : vector<8x1xf32>
      %cst_86 = arith.constant 9.99999996E-13 : f32
      %160 = vector.broadcast %cst_86 : f32 to vector<8x1xf32>
      %161 = arith.addf %159, %160 : vector<8x1xf32>
      %162 = math.rsqrt %161 : vector<8x1xf32>
      %163 = vector.broadcast %162 : vector<8x1xf32> to vector<8x32xf32>
      %164 = arith.mulf %154, %163 : vector<8x32xf32>
      %165 = vector.broadcast %147 : vector<1x32xf32> to vector<8x32xf32>
      %166 = arith.mulf %164, %165 : vector<8x32xf32>
      %167 = vector.broadcast %148 : vector<1x32xf32> to vector<8x32xf32>
      %168 = arith.addf %166, %167 : vector<8x32xf32>
      %c0_87 = arith.constant 0 : index
      %c0_88 = arith.constant 0 : index
      %169 = vector.load %arg19[%c0_87, %c0_88] : memref<8x32xf32, #tpu.memory_space<vmem>>, vector<8x32xf32>
      tpu.vector_store %arg19[%c0_87, %c0_88], %168 {strides = array<i32>} : memref<8x32xf32, #tpu.memory_space<vmem>>, vector<8x32xf32>,
    } else {
    }
    %c0 = arith.constant 0 : index
    %c0_1 = arith.constant 0 : index
    %3 = vector.load %arg19[%c0, %c0_1] : memref<8x32xf32, #tpu.memory_space<vmem>>, vector<8x32xf32>
    %c0_2 = arith.constant 0 : index
    %c0_3 = arith.constant 0 : index
    %c0_4 = arith.constant 0 : index
    %4 = vector.load %arg3[%c0_2, %c0_3, %c0_4] : memref<1x1x8xf32, #tpu.memory_space<vmem>>, vector<1x1x8xf32>
    %5 = vector.shape_cast %4 : vector<1x1x8xf32> to vector<1x8xf32>
    %6 = arith.truncf %3 : vector<8x32xf32> to vector<8x32xbf16>
    %c0_5 = arith.constant 0 : index
    %c0_6 = arith.constant 0 : index
    %c0_7 = arith.constant 0 : index
    %7 = vector.load %arg6[%c0_5, %c0_6, %c0_7] : memref<1x32x96xbf16, #tpu.memory_space<vmem>>, vector<1x32x96xbf16>
    %8 = vector.shape_cast %7 : vector<1x32x96xbf16> to vector<32x96xbf16>
    %cst = arith.constant dense<0.000000e+00> : vector<8x96xf32>
    %9 = tpu.matmul %6, %8, %cst {dimension_numbers = #tpu.dot_dimension_numbers<[1], [0], [0], [1], [0, 0, 1, 1], [], []>} : vector<8x32xbf16>, vector<32x96xbf16>, vector<8x96xf32> -> vector<8x96xf32>
    %c0_8 = arith.constant 0 : index
    %c0_9 = arith.constant 0 : index
    %c0_10 = arith.constant 0 : index
    %10 = vector.load %arg7[%c0_8, %c0_9, %c0_10] : memref<1x1x96xf32, #tpu.memory_space<vmem>>, vector<1x1x96xf32>
    %11 = vector.shape_cast %10 : vector<1x1x96xf32> to vector<1x96xf32>
    %12 = vector.broadcast %11 : vector<1x96xf32> to vector<8x96xf32>
    %13 = arith.addf %9, %12 : vector<8x96xf32>
    %14 = vector.extract_strided_slice %13 {offsets = [0, 0], sizes = [8, 16], strides = [1, 1]} : vector<8x96xf32> to vector<8x16xf32>
    %15 = arith.truncf %14 : vector<8x16xf32> to vector<8x16xbf16>
    %16 = vector.extract_strided_slice %13 {offsets = [0, 32], sizes = [8, 16], strides = [1, 1]} : vector<8x96xf32> to vector<8x16xf32>
    %17 = arith.truncf %16 : vector<8x16xf32> to vector<8x16xbf16>
    %18 = vector.extract_strided_slice %13 {offsets = [0, 64], sizes = [8, 16], strides = [1, 1]} : vector<8x96xf32> to vector<8x16xf32>
    %19 = arith.truncf %18 : vector<8x16xf32> to vector<8x16xbf16>
    %cst_11 = arith.constant dense<0.000000e+00> : vector<8x8xf32>
    %20 = tpu.matmul %15, %17, %cst_11 {dimension_numbers = #tpu.dot_dimension_numbers<[1], [1], [0], [0], [0, 0, 1, 0], [], []>} : vector<8x16xbf16>, vector<8x16xbf16>, vector<8x8xf32> -> vector<8x8xf32>
    %21 = vector.broadcast %5 : vector<1x8xf32> to vector<8x8xf32>
    %22 = arith.addf %20, %21 : vector<8x8xf32>
    %cst_12 = arith.constant dense<0xFF800000> : vector<8xf32>
    %23 = vector.multi_reduction <maximumf>, %22, %cst_12 [1] : vector<8x8xf32> to vector<8xf32>
    %24 = vector.shape_cast %23 : vector<8xf32> to vector<8x1xf32>
    %25 = vector.broadcast %24 : vector<8x1xf32> to vector<8x8xf32>
    %26 = arith.subf %22, %25 : vector<8x8xf32>
    %27 = math.exp %26 : vector<8x8xf32>
    %cst_13 = arith.constant dense<0.000000e+00> : vector<8xf32>
    %28 = vector.multi_reduction <add>, %27, %cst_13 [1] : vector<8x8xf32> to vector<8xf32>
    %29 = vector.shape_cast %28 : vector<8xf32> to vector<8x1xf32>
    %30 = tpu.reciprocal %29 {approx = true} : vector<8x1xf32> -> vector<8x1xf32>
    %31 = vector.broadcast %30 : vector<8x1xf32> to vector<8x8xf32>
    %32 = arith.mulf %27, %31 : vector<8x8xf32>
    %33 = arith.truncf %32 : vector<8x8xf32> to vector<8x8xbf16>
    %cst_14 = arith.constant dense<0.000000e+00> : vector<8x16xf32>
    %34 = tpu.matmul %33, %19, %cst_14 {dimension_numbers = #tpu.dot_dimension_numbers<[1], [0], [0], [1], [0, 0, 1, 1], [], []>} : vector<8x8xbf16>, vector<8x16xbf16>, vector<8x16xf32> -> vector<8x16xf32>
    %c0_15 = arith.constant 0 : index
    %c0_16 = arith.constant 0 : index
    %35 = vector.load %arg20[%c0_15, %c0_16] : memref<8x32xf32, #tpu.memory_space<vmem>>, vector<8x16xf32>
    tpu.vector_store %arg20[%c0_15, %c0_16], %34 {strides = array<i32>} : memref<8x32xf32, #tpu.memory_space<vmem>>, vector<8x16xf32>,
    %36 = vector.extract_strided_slice %13 {offsets = [0, 16], sizes = [8, 16], strides = [1, 1]} : vector<8x96xf32> to vector<8x16xf32>
    %37 = arith.truncf %36 : vector<8x16xf32> to vector<8x16xbf16>
    %38 = vector.extract_strided_slice %13 {offsets = [0, 48], sizes = [8, 16], strides = [1, 1]} : vector<8x96xf32> to vector<8x16xf32>
    %39 = arith.truncf %38 : vector<8x16xf32> to vector<8x16xbf16>
    %40 = vector.extract_strided_slice %13 {offsets = [0, 80], sizes = [8, 16], strides = [1, 1]} : vector<8x96xf32> to vector<8x16xf32>
    %41 = arith.truncf %40 : vector<8x16xf32> to vector<8x16xbf16>
    %cst_17 = arith.constant dense<0.000000e+00> : vector<8x8xf32>
    %42 = tpu.matmul %37, %39, %cst_17 {dimension_numbers = #tpu.dot_dimension_numbers<[1], [1], [0], [0], [0, 0, 1, 0], [], []>} : vector<8x16xbf16>, vector<8x16xbf16>, vector<8x8xf32> -> vector<8x8xf32>
    %43 = vector.broadcast %5 : vector<1x8xf32> to vector<8x8xf32>
    %44 = arith.addf %42, %43 : vector<8x8xf32>
    %cst_18 = arith.constant dense<0xFF800000> : vector<8xf32>
    %45 = vector.multi_reduction <maximumf>, %44, %cst_18 [1] : vector<8x8xf32> to vector<8xf32>
    %46 = vector.shape_cast %45 : vector<8xf32> to vector<8x1xf32>
    %47 = vector.broadcast %46 : vector<8x1xf32> to vector<8x8xf32>
    %48 = arith.subf %44, %47 : vector<8x8xf32>
    %49 = math.exp %48 : vector<8x8xf32>
    %cst_19 = arith.constant dense<0.000000e+00> : vector<8xf32>
    %50 = vector.multi_reduction <add>, %49, %cst_19 [1] : vector<8x8xf32> to vector<8xf32>
    %51 = vector.shape_cast %50 : vector<8xf32> to vector<8x1xf32>
    %52 = tpu.reciprocal %51 {approx = true} : vector<8x1xf32> -> vector<8x1xf32>
    %53 = vector.broadcast %52 : vector<8x1xf32> to vector<8x8xf32>
    %54 = arith.mulf %49, %53 : vector<8x8xf32>
    %55 = arith.truncf %54 : vector<8x8xf32> to vector<8x8xbf16>
    %cst_20 = arith.constant dense<0.000000e+00> : vector<8x16xf32>
    %56 = tpu.matmul %55, %41, %cst_20 {dimension_numbers = #tpu.dot_dimension_numbers<[1], [0], [0], [1], [0, 0, 1, 1], [], []>} : vector<8x8xbf16>, vector<8x16xbf16>, vector<8x16xf32> -> vector<8x16xf32>
    %c0_21 = arith.constant 0 : index
    %c16 = arith.constant 16 : index
    %57 = vector.load %arg20[%c0_21, %c16] : memref<8x32xf32, #tpu.memory_space<vmem>>, vector<8x16xf32>
    tpu.vector_store %arg20[%c0_21, %c16], %56 {strides = array<i32>} : memref<8x32xf32, #tpu.memory_space<vmem>>, vector<8x16xf32>,
    %c0_22 = arith.constant 0 : index
    %c0_23 = arith.constant 0 : index
    %58 = vector.load %arg20[%c0_22, %c0_23] : memref<8x32xf32, #tpu.memory_space<vmem>>, vector<8x32xf32>
    %59 = arith.truncf %58 : vector<8x32xf32> to vector<8x32xbf16>
    %c0_24 = arith.constant 0 : index
    %c0_25 = arith.constant 0 : index
    %c0_26 = arith.constant 0 : index
    %60 = vector.load %arg8[%c0_24, %c0_25, %c0_26] : memref<1x32x32xbf16, #tpu.memory_space<vmem>>, vector<1x32x32xbf16>
    %61 = vector.shape_cast %60 : vector<1x32x32xbf16> to vector<32x32xbf16>
    %cst_27 = arith.constant dense<0.000000e+00> : vector<8x32xf32>
    %62 = tpu.matmul %59, %61, %cst_27 {dimension_numbers = #tpu.dot_dimension_numbers<[1], [0], [0], [1], [0, 0, 1, 1], [], []>} : vector<8x32xbf16>, vector<32x32xbf16>, vector<8x32xf32> -> vector<8x32xf32>
    %c0_28 = arith.constant 0 : index
    %c0_29 = arith.constant 0 : index
    %c0_30 = arith.constant 0 : index
    %63 = vector.load %arg9[%c0_28, %c0_29, %c0_30] : memref<1x1x32xf32, #tpu.memory_space<vmem>>, vector<1x1x32xf32>
    %64 = vector.shape_cast %63 : vector<1x1x32xf32> to vector<1x32xf32>
    %65 = vector.broadcast %64 : vector<1x32xf32> to vector<8x32xf32>
    %66 = arith.addf %62, %65 : vector<8x32xf32>
    %67 = arith.addf %66, %3 : vector<8x32xf32>
    %c0_31 = arith.constant 0 : index
    %c0_32 = arith.constant 0 : index
    %c0_33 = arith.constant 0 : index
    %68 = vector.load %arg10[%c0_31, %c0_32, %c0_33] : memref<1x1x32xf32, #tpu.memory_space<vmem>>, vector<1x1x32xf32>
    %69 = vector.shape_cast %68 : vector<1x1x32xf32> to vector<1x32xf32>
    %c0_34 = arith.constant 0 : index
    %c0_35 = arith.constant 0 : index
    %c0_36 = arith.constant 0 : index
    %70 = vector.load %arg11[%c0_34, %c0_35, %c0_36] : memref<1x1x32xf32, #tpu.memory_space<vmem>>, vector<1x1x32xf32>
    %71 = vector.shape_cast %70 : vector<1x1x32xf32> to vector<1x32xf32>
    %cst_37 = arith.constant dense<0.000000e+00> : vector<8xf32>
    %72 = vector.multi_reduction <add>, %67, %cst_37 [1] : vector<8x32xf32> to vector<8xf32>
    %73 = vector.shape_cast %72 : vector<8xf32> to vector<8x1xf32>
    %cst_38 = arith.constant 3.200000e+01 : f32
    %74 = vector.broadcast %cst_38 : f32 to vector<8x1xf32>
    %75 = arith.divf %73, %74 : vector<8x1xf32>
    %76 = vector.broadcast %75 : vector<8x1xf32> to vector<8x32xf32>
    %77 = arith.subf %67, %76 : vector<8x32xf32>
    %78 = arith.mulf %77, %77 : vector<8x32xf32>
    %cst_39 = arith.constant dense<0.000000e+00> : vector<8xf32>
    %79 = vector.multi_reduction <add>, %78, %cst_39 [1] : vector<8x32xf32> to vector<8xf32>
    %80 = vector.shape_cast %79 : vector<8xf32> to vector<8x1xf32>
    %cst_40 = arith.constant 3.200000e+01 : f32
    %81 = vector.broadcast %cst_40 : f32 to vector<8x1xf32>
    %82 = arith.divf %80, %81 : vector<8x1xf32>
    %cst_41 = arith.constant 9.99999996E-13 : f32
    %83 = vector.broadcast %cst_41 : f32 to vector<8x1xf32>
    %84 = arith.addf %82, %83 : vector<8x1xf32>
    %85 = math.rsqrt %84 : vector<8x1xf32>
    %86 = vector.broadcast %85 : vector<8x1xf32> to vector<8x32xf32>
    %87 = arith.mulf %77, %86 : vector<8x32xf32>
    %88 = vector.broadcast %69 : vector<1x32xf32> to vector<8x32xf32>
    %89 = arith.mulf %87, %88 : vector<8x32xf32>
    %90 = vector.broadcast %71 : vector<1x32xf32> to vector<8x32xf32>
    %91 = arith.addf %89, %90 : vector<8x32xf32>
    %92 = arith.truncf %91 : vector<8x32xf32> to vector<8x32xbf16>
    %c0_42 = arith.constant 0 : index
    %c0_43 = arith.constant 0 : index
    %c0_44 = arith.constant 0 : index
    %93 = vector.load %arg12[%c0_42, %c0_43, %c0_44] : memref<1x32x64xbf16, #tpu.memory_space<vmem>>, vector<1x32x64xbf16>
    %94 = vector.shape_cast %93 : vector<1x32x64xbf16> to vector<32x64xbf16>
    %cst_45 = arith.constant dense<0.000000e+00> : vector<8x64xf32>
    %95 = tpu.matmul %92, %94, %cst_45 {dimension_numbers = #tpu.dot_dimension_numbers<[1], [0], [0], [1], [0, 0, 1, 1], [], []>} : vector<8x32xbf16>, vector<32x64xbf16>, vector<8x64xf32> -> vector<8x64xf32>
    %c0_46 = arith.constant 0 : index
    %c0_47 = arith.constant 0 : index
    %c0_48 = arith.constant 0 : index
    %96 = vector.load %arg13[%c0_46, %c0_47, %c0_48] : memref<1x1x64xf32, #tpu.memory_space<vmem>>, vector<1x1x64xf32>
    %97 = vector.shape_cast %96 : vector<1x1x64xf32> to vector<1x64xf32>
    %98 = vector.broadcast %97 : vector<1x64xf32> to vector<8x64xf32>
    %99 = arith.addf %95, %98 : vector<8x64xf32>
    %cst_49 = arith.constant 5.000000e-01 : f32
    %100 = vector.broadcast %cst_49 : f32 to vector<8x64xf32>
    %101 = arith.mulf %100, %99 : vector<8x64xf32>
    %cst_50 = arith.constant 0.707106769 : f32
    %102 = vector.broadcast %cst_50 : f32 to vector<8x64xf32>
    %103 = arith.mulf %99, %102 : vector<8x64xf32>
    %104 = math.erf %103 : vector<8x64xf32>
    %cst_51 = arith.constant 1.000000e+00 : f32
    %105 = vector.broadcast %cst_51 : f32 to vector<8x64xf32>
    %106 = arith.addf %105, %104 : vector<8x64xf32>
    %107 = arith.mulf %101, %106 : vector<8x64xf32>
    %108 = arith.truncf %107 : vector<8x64xf32> to vector<8x64xbf16>
    %c0_52 = arith.constant 0 : index
    %c0_53 = arith.constant 0 : index
    %c0_54 = arith.constant 0 : index
    %109 = vector.load %arg14[%c0_52, %c0_53, %c0_54] : memref<1x64x32xbf16, #tpu.memory_space<vmem>>, vector<1x64x32xbf16>
    %110 = vector.shape_cast %109 : vector<1x64x32xbf16> to vector<64x32xbf16>
    %cst_55 = arith.constant dense<0.000000e+00> : vector<8x32xf32>
    %111 = tpu.matmul %108, %110, %cst_55 {dimension_numbers = #tpu.dot_dimension_numbers<[1], [0], [0], [1], [0, 0, 1, 1], [], []>} : vector<8x64xbf16>, vector<64x32xbf16>, vector<8x32xf32> -> vector<8x32xf32>
    %c0_56 = arith.constant 0 : index
    %c0_57 = arith.constant 0 : index
    %c0_58 = arith.constant 0 : index
    %112 = vector.load %arg15[%c0_56, %c0_57, %c0_58] : memref<1x1x32xf32, #tpu.memory_space<vmem>>, vector<1x1x32xf32>
    %113 = vector.shape_cast %112 : vector<1x1x32xf32> to vector<1x32xf32>
    %114 = vector.broadcast %113 : vector<1x32xf32> to vector<8x32xf32>
    %115 = arith.addf %111, %114 : vector<8x32xf32>
    %116 = arith.addf %115, %91 : vector<8x32xf32>
    %c0_59 = arith.constant 0 : index
    %c0_60 = arith.constant 0 : index
    %c0_61 = arith.constant 0 : index
    %117 = vector.load %arg16[%c0_59, %c0_60, %c0_61] : memref<1x1x32xf32, #tpu.memory_space<vmem>>, vector<1x1x32xf32>
    %118 = vector.shape_cast %117 : vector<1x1x32xf32> to vector<1x32xf32>
    %c0_62 = arith.constant 0 : index
    %c0_63 = arith.constant 0 : index
    %c0_64 = arith.constant 0 : index
    %119 = vector.load %arg17[%c0_62, %c0_63, %c0_64] : memref<1x1x32xf32, #tpu.memory_space<vmem>>, vector<1x1x32xf32>
    %120 = vector.shape_cast %119 : vector<1x1x32xf32> to vector<1x32xf32>
    %cst_65 = arith.constant dense<0.000000e+00> : vector<8xf32>
    %121 = vector.multi_reduction <add>, %116, %cst_65 [1] : vector<8x32xf32> to vector<8xf32>
    %122 = vector.shape_cast %121 : vector<8xf32> to vector<8x1xf32>
    %cst_66 = arith.constant 3.200000e+01 : f32
    %123 = vector.broadcast %cst_66 : f32 to vector<8x1xf32>
    %124 = arith.divf %122, %123 : vector<8x1xf32>
    %125 = vector.broadcast %124 : vector<8x1xf32> to vector<8x32xf32>
    %126 = arith.subf %116, %125 : vector<8x32xf32>
    %127 = arith.mulf %126, %126 : vector<8x32xf32>
    %cst_67 = arith.constant dense<0.000000e+00> : vector<8xf32>
    %128 = vector.multi_reduction <add>, %127, %cst_67 [1] : vector<8x32xf32> to vector<8xf32>
    %129 = vector.shape_cast %128 : vector<8xf32> to vector<8x1xf32>
    %cst_68 = arith.constant 3.200000e+01 : f32
    %130 = vector.broadcast %cst_68 : f32 to vector<8x1xf32>
    %131 = arith.divf %129, %130 : vector<8x1xf32>
    %cst_69 = arith.constant 9.99999996E-13 : f32
    %132 = vector.broadcast %cst_69 : f32 to vector<8x1xf32>
    %133 = arith.addf %131, %132 : vector<8x1xf32>
    %134 = math.rsqrt %133 : vector<8x1xf32>
    %135 = vector.broadcast %134 : vector<8x1xf32> to vector<8x32xf32>
    %136 = arith.mulf %126, %135 : vector<8x32xf32>
    %137 = vector.broadcast %118 : vector<1x32xf32> to vector<8x32xf32>
    %138 = arith.mulf %136, %137 : vector<8x32xf32>
    %139 = vector.broadcast %120 : vector<1x32xf32> to vector<8x32xf32>
    %140 = arith.addf %138, %139 : vector<8x32xf32>
    %c0_70 = arith.constant 0 : index
    %c0_71 = arith.constant 0 : index
    %141 = vector.load %arg19[%c0_70, %c0_71] : memref<8x32xf32, #tpu.memory_space<vmem>>, vector<8x32xf32>
    tpu.vector_store %arg19[%c0_70, %c0_71], %140 {strides = array<i32>} : memref<8x32xf32, #tpu.memory_space<vmem>>, vector<8x32xf32>,
    %c0_72 = arith.constant 0 : index
    %c0_73 = arith.constant 0 : index
    %c0_74 = arith.constant 0 : index
    %142 = vector.load %arg18[%c0_72, %c0_73, %c0_74] : memref<1x8x32xf32, #tpu.memory_space<vmem>>, vector<1x8x32xf32>
    %143 = vector.shape_cast %142 : vector<1x8x32xf32> to vector<8x32xf32>
    %144 = vector.shape_cast %140 : vector<8x32xf32> to vector<1x8x32xf32>
    tpu.vector_store %arg18[%c0_72, %c0_73, %c0_74], %144 {strides = array<i32>} : memref<1x8x32xf32, #tpu.memory_space<vmem>>, vector<1x8x32xf32>,
    return
  }
  func.func @transform_0(%arg0: i32, %arg1: i32) -> (i32, i32, i32) {
    %c0_i32 = arith.constant 0 : i32
    %c0_i32_0 = arith.constant 0 : i32
    %c0_i32_1 = arith.constant 0 : i32
    return %arg0, %c0_i32, %c0_i32_0 : i32, i32, i32
  }
  func.func @transform_1(%arg0: i32, %arg1: i32) -> (i32, i32, i32) {
    %c0_i32 = arith.constant 0 : i32
    %c0_i32_0 = arith.constant 0 : i32
    %c0_i32_1 = arith.constant 0 : i32
    return %arg0, %c0_i32, %c0_i32_0 : i32, i32, i32
  }
  func.func @transform_2(%arg0: i32, %arg1: i32) -> (i32, i32) {
    %c0_i32 = arith.constant 0 : i32
    %c0_i32_0 = arith.constant 0 : i32
    %c0_i32_1 = arith.constant 0 : i32
    return %c0_i32, %c0_i32_0 : i32, i32
  }
  func.func @transform_3(%arg0: i32, %arg1: i32) -> (i32, i32) {
    %c0_i32 = arith.constant 0 : i32
    %c0_i32_0 = arith.constant 0 : i32
    %c0_i32_1 = arith.constant 0 : i32
    return %c0_i32, %c0_i32_0 : i32, i32
  }
  func.func @transform_4(%arg0: i32, %arg1: i32) -> (i32, i32, i32) {
    %c0_i32 = arith.constant 0 : i32
    %c0_i32_0 = arith.constant 0 : i32
    %c0_i32_1 = arith.constant 0 : i32
    return %arg1, %c0_i32, %c0_i32_0 : i32, i32, i32
  }
  func.func @transform_5(%arg0: i32, %arg1: i32) -> (i32, i32, i32) {
    %c0_i32 = arith.constant 0 : i32
    %c0_i32_0 = arith.constant 0 : i32
    %c0_i32_1 = arith.constant 0 : i32
    return %arg1, %c0_i32, %c0_i32_0 : i32, i32, i32
  }
  func.func @transform_6(%arg0: i32, %arg1: i32) -> (i32, i32, i32) {
    %c0_i32 = arith.constant 0 : i32
    %c0_i32_0 = arith.constant 0 : i32
    %c0_i32_1 = arith.constant 0 : i32
    return %arg1, %c0_i32, %c0_i32_0 : i32, i32, i32
  }
  func.func @transform_7(%arg0: i32, %arg1: i32) -> (i32, i32, i32) {
    %c0_i32 = arith.constant 0 : i32
    %c0_i32_0 = arith.constant 0 : i32
    %c0_i32_1 = arith.constant 0 : i32
    return %arg1, %c0_i32, %c0_i32_0 : i32, i32, i32
  }
  func.func @transform_8(%arg0: i32, %arg1: i32) -> (i32, i32, i32) {
    %c0_i32 = arith.constant 0 : i32
    %c0_i32_0 = arith.constant 0 : i32
    %c0_i32_1 = arith.constant 0 : i32
    return %arg1, %c0_i32, %c0_i32_0 : i32, i32, i32
  }
  func.func @transform_9(%arg0: i32, %arg1: i32) -> (i32, i32, i32) {
    %c0_i32 = arith.constant 0 : i32
    %c0_i32_0 = arith.constant 0 : i32
    %c0_i32_1 = arith.constant 0 : i32
    return %arg1, %c0_i32, %c0_i32_0 : i32, i32, i32
  }
  func.func @transform_10(%arg0: i32, %arg1: i32) -> (i32, i32, i32) {
    %c0_i32 = arith.constant 0 : i32
    %c0_i32_0 = arith.constant 0 : i32
    %c0_i32_1 = arith.constant 0 : i32
    return %arg1, %c0_i32, %c0_i32_0 : i32, i32, i32
  }
  func.func @transform_11(%arg0: i32, %arg1: i32) -> (i32, i32, i32) {
    %c0_i32 = arith.constant 0 : i32
    %c0_i32_0 = arith.constant 0 : i32
    %c0_i32_1 = arith.constant 0 : i32
    return %arg1, %c0_i32, %c0_i32_0 : i32, i32, i32
  }
  func.func @transform_12(%arg0: i32, %arg1: i32) -> (i32, i32, i32) {
    %c0_i32 = arith.constant 0 : i32
    %c0_i32_0 = arith.constant 0 : i32
    %c0_i32_1 = arith.constant 0 : i32
    return %arg1, %c0_i32, %c0_i32_0 : i32, i32, i32
  }
  func.func @transform_13(%arg0: i32, %arg1: i32) -> (i32, i32, i32) {
    %c0_i32 = arith.constant 0 : i32
    %c0_i32_0 = arith.constant 0 : i32
    %c0_i32_1 = arith.constant 0 : i32
    return %arg1, %c0_i32, %c0_i32_0 : i32, i32, i32
  }
  func.func @transform_14(%arg0: i32, %arg1: i32) -> (i32, i32, i32) {
    %c0_i32 = arith.constant 0 : i32
    %c0_i32_0 = arith.constant 0 : i32
    %c0_i32_1 = arith.constant 0 : i32
    return %arg1, %c0_i32, %c0_i32_0 : i32, i32, i32
  }
  func.func @transform_15(%arg0: i32, %arg1: i32) -> (i32, i32, i32) {
    %c0_i32 = arith.constant 0 : i32
    %c0_i32_0 = arith.constant 0 : i32
    %c0_i32_1 = arith.constant 0 : i32
    return %arg1, %c0_i32, %c0_i32_0 : i32, i32, i32
  }
  func.func @transform_16(%arg0: i32, %arg1: i32) -> (i32, i32, i32) {
    %c0_i32 = arith.constant 0 : i32
    %c0_i32_0 = arith.constant 0 : i32
    %c0_i32_1 = arith.constant 0 : i32
    return %arg0, %c0_i32, %c0_i32_0 : i32, i32, i32
  }
}

</mosaic_0001>

<llo_original>
// kernel: token_classifier_forward.3
$region0: #{token_classifier_forward.3}
  #allocation0 [shape = 'u32[]', space=smem, size = 0x4, offset = 0x4, fixed_abs, tag = 'smem constant byte address 0x4 - core index']
  #allocation1 [shape = 'u32[144,128]{1,0:T(1,128)}', space=vmem, size = 0x12000, scoped, tag = 'internal scratch']
  %s0 = inlined_call_operand.vmem [shape: f32[16,32], index: 0, kind: input, shape index: {}]
  %s1 = inlined_call_operand.vmem [shape: f32[32,5], index: 1, kind: input, shape index: {}]
  %s2 = inlined_call_operand.vmem [shape: f32[1,5], index: 2, kind: input, shape index: {}]
  %s3 = inlined_call_operand.vmem [shape: s32[16,1], index: 3, kind: input, shape index: {}]
  %s4 = inlined_call_operand.vmem [shape: f32[16,5], index: 4, kind: output, shape index: {0}]
  %s5 = inlined_call_operand.hbm [shape: f32[1,1], index: 5, kind: output, shape index: {1}]
  %6 = xla_tuple %s4, %s5
  %s7 = sld [smem:[#allocation0]]
  $region34: #{token_classifier_forward.3} parent=0
    _
  %s9 = ssub.s32 1, %s7
  %s10 = scalar_select 0, %s9, %s7
  $region1: #{token_classifier_forward.3} parent=0
    #allocation2 [shape = 'u8[512]{0}', space=vmem, size = 0x400, scoped, tag = 'output window, operand 1, single buffered']
    #allocation3 [shape = 's32[1]{0}', space=sflag, size = 0x4, scoped, tag = 'scoped memory for token_classifier_forward.3']
    %11 = vsyncpa [#allocation3], 0
    // Predicated region
    $region2: #{token_classifier_forward.3} parent=1 // pred_check
      _
    $region3: #{token_classifier_forward.3} parent=1 // pred_check_branch
      %13 = sbr.rel (0) target = $region5
    $region4: #{token_classifier_forward.3} parent=1 // pred_region
      _
    $region5: #{token_classifier_forward.3} parent=1 // pred_fallthru
      _
    // Predicated region
    $region6: #{token_classifier_forward.3} parent=1 // pred_check
      _
    $region7: #{token_classifier_forward.3} parent=1 // pred_check_branch
      %15 = sbr.rel (0) target = $region9
    $region8: #{token_classifier_forward.3} parent=1 // pred_region
      _
    $region9: #{token_classifier_forward.3} parent=1 // pred_fallthru
      _
    // Predicated region
    $region10: #{token_classifier_forward.3} parent=1 // pred_check
      _
    $region11: #{token_classifier_forward.3} parent=1 // pred_check_branch
      %17 = sbr.rel (0) target = $region13
    $region12: #{token_classifier_forward.3} parent=1 // pred_region
      _
    $region13: #{token_classifier_forward.3} parent=1 // pred_fallthru
      _
    // Predicated region
    $region14: #{token_classifier_forward.3} parent=1 // pred_check
      _
    $region15: #{token_classifier_forward.3} parent=1 // pred_check_branch
      %19 = sbr.rel (0) target = $region17
    $region16: #{token_classifier_forward.3} parent=1 // pred_region
      _
    $region17: #{token_classifier_forward.3} parent=1 // pred_fallthru
      _
    %v20 = vld [vmem:[%s0] sm:$0xff]
    %v21 = vld [vmem:[%s0 + $0x8] sm:$0xff]
    %v22 = vld [vmem:[%s1] sm:$0xff]
    %v23 = vld [vmem:[%s1 + $0x8] sm:$0xff]
    %v24 = vld [vmem:[%s1 + $0x10] sm:$0xff]
    %v25 = vld [vmem:[%s1 + $0x18] sm:$0xff]
    %v26 = vld [vmem:[%s2] sm:$0x1]
    %v28 = vlaneseq
    %v29 = vshrl.u32 %v28, 7
    %v30 = vsub.s32 0, %v29
    %v31 = vrot.slane %v26, %v30
    %vm33 = vcmask 261120
    %v35 = vsel %vm33, %v20, 0
    %v38 = vsel %vm33, %v21, 0
    %40 = vmatprep.subr.mxu0 0.0
    %41 = vmatpush1.msra.mxu0 %v22
    %42 = vmatprep.subr.mxu0 0.0
    %43 = vmatpush1.msra.mxu0 %v23
    %44 = vmatprep.subr.mxu0 0.0
    %45 = vmatpush1.msra.mxu0 %v24
    %46 = vmatprep.subr.mxu0 0.0
    %47 = vmatpush1.msra.mxu0 %v25
    %48 = vmatprep.subr.mxu0 0.0
    %49 = vmatpush1.msra.mxu0 0.0
    %50 = vmatprep.subr.mxu0 0.0
    %51 = vmatpush1.msra.mxu0 0.0
    %52 = vmatprep.subr.mxu0 0.0
    %53 = vmatpush1.msra.mxu0 0.0
    %54 = vmatprep.subr.mxu0 0.0
    %55 = vmatpush1.msra.mxu0 0.0
    %56 = vmatprep.subr.mxu0 0.0
    %57 = vmatpush1.msra.mxu0 0.0
    %58 = vmatprep.subr.mxu0 0.0
    %59 = vmatpush1.msra.mxu0 0.0
    %60 = vmatprep.subr.mxu0 0.0
    %61 = vmatpush1.msra.mxu0 0.0
    %62 = vmatprep.subr.mxu0 0.0
    %63 = vmatpush1.msra.mxu0 0.0
    %64 = vmatprep.subr.mxu0 0.0
    %65 = vmatpush1.msra.mxu0 0.0
    %66 = vmatprep.subr.mxu0 0.0
    %67 = vmatpush1.msra.mxu0 0.0
    %68 = vmatprep.subr.mxu0 0.0
    %69 = vmatpush1.msra.mxu0 0.0
    %70 = vmatprep.subr.mxu0 0.0
    %71 = vmatpush1.msra.mxu0 0.0
    %72 = vmatprep.subr.mxu0 0.0
    %73 = vmatpush1.msra.mxu0 0.0
    %74 = vmatprep.subr.mxu0 0.0
    %75 = vmatpush1.msra.mxu0 0.0
    %76 = vmatprep.subr.mxu0 0.0
    %77 = vmatpush1.msra.mxu0 0.0
    %78 = vmatprep.subr.mxu0 0.0
    %79 = vmatpush1.msra.mxu0 0.0
    %80 = vmatprep.subr.mxu0 0.0
    %81 = vmatpush1.msra.mxu0 0.0
    %82 = vmatprep.subr.mxu0 0.0
    %83 = vmatpush1.msra.mxu0 0.0
    %84 = vmatprep.subr.mxu0 0.0
    %85 = vmatpush1.msra.mxu0 0.0
    %86 = vmatprep.subr.mxu0 0.0
    %87 = vmatpush1.msra.mxu0 0.0
    %88 = vmatprep.subr.mxu0 0.0
    %89 = vmatpush1.msra.mxu0 0.0
    %90 = vmatprep.subr.mxu0 0.0
    %91 = vmatpush1.msra.mxu0 0.0
    %92 = vmatprep.subr.mxu0 0.0
    %93 = vmatpush1.msra.mxu0 0.0
    %94 = vmatprep.subr.mxu0 0.0
    %95 = vmatpush1.msra.mxu0 0.0
    %96 = vmatprep.subr.mxu0 0.0
    %97 = vmatpush1.msra.mxu0 0.0
    %98 = vmatprep.subr.mxu0 0.0
    %99 = vmatpush1.msra.mxu0 0.0
    %100 = vmatprep.subr.mxu0 0.0
    %101 = vmatpush1.msra.mxu0 0.0
    %102 = vmatprep.subr.mxu0 0.0
    %103 = vmatpush1.msra.mxu0 0.0
    %104 = vmatprep.mubr.f32.mxu0 0.0
    %105 = vmatmul.mubr.f32.gmra.mrb[0].mxu0 %v35
    %v106 = vpop.f32.mrb[0].mxu0
    %v107 = vadd.f32 %v31, %v106
    %v108 = vpop.f32.mrb[0].mxu0
    %109 = vmatprep.mubr.f32.mxu0 0.0
    %110 = vmatmul.mubr.f32.gmra.mrb[0].mxu0 %v38
    %v111 = vpop.f32.mrb[0].mxu0
    %v112 = vadd.f32 %v31, %v111
    %v113 = vpop.f32.mrb[0].mxu0
    %114 = vdwg.mxu0
    %vm115 = vcmask 39936
    %116 = vst.msk [vmem:[%s4] sm:$0xff] %vm115, %v107
    %117 = vst.msk [vmem:[%s4 + $0x8] sm:$0xff] %vm115, %v112
    %v118 = vld [vmem:[%s3] sm:$0xff]
    %v119 = vld [vmem:[%s3 + $0x8] sm:$0xff]
    %v120 = vsel %vm115, %v107, -inf
    %121 = vmax.xlane.f32.xlu0 %v120
    %v122 = vpop.xlane.xlu0 %121
    %v123 = vsel %vm115, %v112, -inf
    %124 = vmax.xlane.f32.xlu0 %v123
    %v125 = vpop.xlane.xlu0 %124
    %v126 = vsub.f32 %v107, %v122
    %v127 = vsub.f32 %v112, %v125
    %v128 = vmul.f32 %v126, 1.442695
    %v129 = vpow.pop %v128
    %v130 = vmul.f32 %v127, 1.442695
    %v131 = vpow.pop %v130
    %v132 = vsel %vm115, %v129, 0.0
    %133 = vadd.xlane.f32.xlu0 %v132
    %v134 = vpop.xlane.xlu0 %133
    %v135 = vsel %vm115, %v131, 0.0
    %136 = vadd.xlane.f32.xlu0 %v135
    %v137 = vpop.xlane.xlu0 %136
    %v138 = vlog2.pop %v134
    %v139 = vmul.f32 %v138, 0.6931472
    %v140 = vlog2.pop %v137
    %v141 = vmul.f32 %v140, 0.6931472
    %v142 = vadd.f32 %v139, %v122
    %v143 = vadd.f32 %v141, %v125
    %v144 = vlaneseq
    %v145 = vand.u32 %v144, 127
    %146 = vset.pattern.permute.xlu0 0
    %147 = vperm.xlu0 %146, %v118
    %v148 = vpop.permute.xlu0 %147
    %149 = vset.pattern.permute.xlu0 0
    %150 = vperm.xlu0 %149, %v119
    %v151 = vpop.permute.xlu0 %150
    %vm152 = vcmp.eq.s32.totalorder %v145, %v148
    %vm153 = vcmp.eq.s32.totalorder %v145, %v151
    %v154 = vsel %vm152, 1, 0
    %v155 = vsel %vm153, 1, 0
    %v156 = vcvt.s32.f32 %v154
    %v157 = vcvt.s32.f32 %v155
    %v158 = vmul.f32 %v156, %v107
    %v159 = vmul.f32 %v157, %v112
    %v160 = vsel %vm115, %v158, 0.0
    %161 = vadd.xlane.f32.xlu0 %v160
    %v162 = vpop.xlane.xlu0 %161
    %v163 = vsel %vm115, %v159, 0.0
    %164 = vadd.xlane.f32.xlu0 %v163
    %v165 = vpop.xlane.xlu0 %164
    %v166 = vsub.f32 %v142, %v162
    %v167 = vsub.f32 %v143, %v165
    %vm168 = vcmp.ne.s32.totalorder %v118, 4294967196
    %vm169 = vcmp.ne.s32.totalorder %v119, 4294967196
    %v170 = vsel %vm168, 1, 0
    %v171 = vsel %vm169, 1, 0
    %v172 = vcvt.s32.f32 %v170
    %v173 = vcvt.s32.f32 %v171
    %v174 = vmul.f32 %v166, %v172
    %v175 = vmul.f32 %v167, %v173
    %vm176 = vcmask 7168
    %v177 = vsel %vm176, %v174, 0.0
    %v178 = vsel %vm176, %v175, 0.0
    %v179 = vadd.f32 %v177, %v178
    %180 = vadd.xlane.f32.xlu0 %v179
    %v181 = vpop.xlane.xlu0 %180
    %v182 = vrot.slane %v181, 4
    %v183 = vadd.f32 %v181, %v182
    %v184 = vrot.slane %v183, 2
    %v185 = vadd.f32 %v183, %v184
    %v186 = vrot.slane %v185, 1
    %v187 = vadd.f32 %v185, %v186
    %s188 = vtos %v187
    %v189 = vsel %vm176, %v172, 0.0
    %v190 = vsel %vm176, %v173, 0.0
    %v191 = vadd.f32 %v189, %v190
    %192 = vadd.xlane.f32.xlu0 %v191
    %v193 = vpop.xlane.xlu0 %192
    %v194 = vrot.slane %v193, 4
    %v195 = vadd.f32 %v193, %v194
    %v196 = vrot.slane %v195, 2
    %v197 = vadd.f32 %v195, %v196
    %v198 = vrot.slane %v197, 1
    %v199 = vadd.f32 %v197, %v198
    %s200 = vtos %v199
    %s201 = smax.f32 %s200, 1.0
    %v202 = vstv %s201
    %v203 = vrcp.pop %v202
    %s204 = vtos %v203
    %s205 = smul.f32 %s188, %s204
    %v206 = vstv %s205
    %vm207 = vcmask 0
    %208 = vst.msk [vmem:[#allocation2] sm:$0x1] %vm207, %v206
    // Predicated region
    $region18: #{token_classifier_forward.3} parent=1 // pred_check
      _
    $region19: #{token_classifier_forward.3} parent=1 // pred_check_branch
      %210 = sbr.rel (0) target = $region21
    $region20: #{token_classifier_forward.3} parent=1 // pred_region
      _
    $region21: #{token_classifier_forward.3} parent=1 // pred_fallthru
      _
    // Predicated region
    $region22: #{token_classifier_forward.3} parent=1 // pred_check
      _
    $region23: #{token_classifier_forward.3} parent=1 // pred_check_branch
      %212 = sbr.rel (0) target = $region25
    $region24: #{token_classifier_forward.3} parent=1 // pred_region
      %s214 = ssub.s32 16, 16
      %215 = vsyncadd [#allocation3], %s214
      %s217 = sshll.u32 [#allocation2], 4
      %s218 = int_to_ptr.vmem [resolvable:$true] %s217
      %220 = dma.vmem_to_hbm [thread:$0]  %s218, 16, %s5, [#allocation3]
    $region25: #{token_classifier_forward.3} parent=1 // pred_fallthru
      _
    // Predicated region
    $region26: #{token_classifier_forward.3} parent=1 // pred_check
      _
    $region27: #{token_classifier_forward.3} parent=1 // pred_check_branch
      %222 = sbr.rel (0) target = $region29
    $region28: #{token_classifier_forward.3} parent=1 // pred_region
      _
    $region29: #{token_classifier_forward.3} parent=1 // pred_fallthru
      _
    // Predicated region
    $region30: #{token_classifier_forward.3} parent=1 // pred_check
      _
    $region31: #{token_classifier_forward.3} parent=1 // pred_check_branch
      %224 = sbr.rel (0) target = $region33
    $region32: #{token_classifier_forward.3} parent=1 // pred_region
      %225 = dma.done [#allocation3], 16
    $region33: #{token_classifier_forward.3} parent=1 // pred_fallthru
      _
    %226 = vsyncpa [#allocation3], 1

// kernel: token_classifier_forward.2
$region0: #{token_classifier_forward.2}
  #allocation0 [shape = 'u32[]', space=smem, size = 0x4, offset = 0x4, fixed_abs, tag = 'smem constant byte address 0x4 - core index']
  #allocation1 [shape = 'u32[144,128]{1,0:T(1,128)}', space=vmem, size = 0x12000, scoped, tag = 'internal scratch']
  #allocation2 [shape = 'f32[8,32]{1,0:T(8,128)}', space=vmem, size = 0x1000, scoped, tag = 'scratch operand']
  #allocation3 [shape = 'f32[8,32]{1,0:T(8,128)}', space=vmem, size = 0x1000, scoped, tag = 'scratch operand']
  %s0 = inlined_call_operand.vmem [shape: f32[2,8,32], index: 0, kind: input, shape index: {}]
  %s1 = inlined_call_operand.vmem [shape: f32[2,1,8], index: 1, kind: input, shape index: {}]
  %s2 = inlined_call_operand.vmem [shape: f32[1,32], index: 2, kind: input, shape index: {}]
  %s3 = inlined_call_operand.vmem [shape: f32[1,32], index: 3, kind: input, shape index: {}]
  %s4 = inlined_call_operand.vmem [shape: bf16[2,32,96], index: 4, kind: input, shape index: {}]
  %s5 = inlined_call_operand.vmem [shape: f32[2,1,96], index: 5, kind: input, shape index: {}]
  %s6 = inlined_call_operand.vmem [shape: bf16[2,32,32], index: 6, kind: input, shape index: {}]
  %s7 = inlined_call_operand.vmem [shape: f32[2,1,32], index: 7, kind: input, shape index: {}]
  %s8 = inlined_call_operand.vmem [shape: f32[2,1,32], index: 8, kind: input, shape index: {}]
  %s9 = inlined_call_operand.vmem [shape: f32[2,1,32], index: 9, kind: input, shape index: {}]
  %s10 = inlined_call_operand.vmem [shape: bf16[2,32,64], index: 10, kind: input, shape index: {}]
  %s11 = inlined_call_operand.vmem [shape: f32[2,1,64], index: 11, kind: input, shape index: {}]
  %s12 = inlined_call_operand.vmem [shape: bf16[2,64,32], index: 12, kind: input, shape index: {}]
  %s13 = inlined_call_operand.vmem [shape: f32[2,1,32], index: 13, kind: input, shape index: {}]
  %s14 = inlined_call_operand.vmem [shape: f32[2,1,32], index: 14, kind: input, shape index: {}]
  %s15 = inlined_call_operand.vmem [shape: f32[2,1,32], index: 15, kind: input, shape index: {}]
  %s16 = inlined_call_operand.vmem [shape: f32[2,8,32], index: 16, kind: output, shape index: {}]
  %s17 = sld [smem:[#allocation0]]
  $region101: #{token_classifier_forward.2} parent=0
    _
  %s19 = ssub.s32 1, %s17
  %s20 = scalar_select 0, %s19, %s17
  loop: start=0, step=1, limit=6
  $region2: #{token_classifier_forward.2} parent=0 // loop_pre_header
    _
  $region3: #{token_classifier_forward.2} parent=0 // loop_header
    %s22 = sphi 0, %s26
    %p23 = scmp.ge.s32.totalorder %s22, 6
    %s29 = sphi 0, %s41
    %s30 = sphi 0, %s37
    %s31 = sphi 0, %s29
    %s32 = sphi 0, %s30
    %s33 = sphi 0, %s31
    %s34 = sphi 0, %s32
    %s44 = sphi 0, %s46
    %s47 = sphi 0, %s44
    %s48 = sphi 0, %s47
    %s64 = sphi 0, %s48
    %s70 = sphi 0, %s72
    %s73 = sphi 0, %s70
    %s74 = sphi 0, %s73
    %s90 = sphi 0, %s74
    %s94 = sphi 0, %s94
    %s96 = sphi 0, %s94
    %s97 = sphi 0, %s96
    %s111 = sphi 0, %s97
    %s115 = sphi 0, %s115
    %s117 = sphi 0, %s115
    %s118 = sphi 0, %s117
    %s132 = sphi 0, %s118
    %s138 = sphi 0, %s140
    %s141 = sphi 0, %s138
    %s142 = sphi 0, %s141
    %s158 = sphi 0, %s142
    %s164 = sphi 0, %s166
    %s167 = sphi 0, %s164
    %s168 = sphi 0, %s167
    %s184 = sphi 0, %s168
    %s190 = sphi 0, %s192
    %s193 = sphi 0, %s190
    %s194 = sphi 0, %s193
    %s210 = sphi 0, %s194
    %s216 = sphi 0, %s218
    %s219 = sphi 0, %s216
    %s220 = sphi 0, %s219
    %s236 = sphi 0, %s220
    %s242 = sphi 0, %s244
    %s245 = sphi 0, %s242
    %s246 = sphi 0, %s245
    %s262 = sphi 0, %s246
    %s268 = sphi 0, %s270
    %s271 = sphi 0, %s268
    %s272 = sphi 0, %s271
    %s288 = sphi 0, %s272
    %s294 = sphi 0, %s296
    %s297 = sphi 0, %s294
    %s298 = sphi 0, %s297
    %s314 = sphi 0, %s298
    %s320 = sphi 0, %s322
    %s323 = sphi 0, %s320
    %s324 = sphi 0, %s323
    %s340 = sphi 0, %s324
    %s346 = sphi 0, %s348
    %s349 = sphi 0, %s346
    %s350 = sphi 0, %s349
    %s366 = sphi 0, %s350
    %s372 = sphi 0, %s374
    %s375 = sphi 0, %s372
    %s376 = sphi 0, %s375
    %s392 = sphi 0, %s376
    %s398 = sphi 0, %s400
    %s401 = sphi 0, %s398
    %s402 = sphi 0, %s401
    %s418 = sphi 0, %s402
    %s424 = sphi 0, %s426
    %s427 = sphi 0, %s424
    %s428 = sphi 0, %s427
    %s444 = sphi 0, %s428
    %s450 = sphi 0, %s452
    %s453 = sphi 0, %s450
    %s454 = sphi 0, %s453
    %s470 = sphi 0, %s454
  $region4: #{token_classifier_forward.2} parent=0 // loop_header_branch
    %25 = sbr.rel (%p23) target = $region8
  $region5: #{token_classifier_forward.2} parent=0 // loop_body
    %s27 = ssub.s32 %s22, 1
    %s28 = ssub.s32 %s22, 2
    %s35 = sadd.s32 1, %s30
    %p36 = scmp.ge.s32.totalorder %s35, 2
    %s37 = scalar_select %p36, 0, %s35
    %s38 = sadd.s32 1, %s29
    %s39 = scalar_select %p36, %s38, %s29
    %p40 = scmp.ge.s32.totalorder %s39, 2
    %s41 = scalar_select %p40, 0, %s39
    %s42 = ssub.s32 %s29, %s41
    %p43 = scmp.eq.s32.totalorder %s42, 0
    %s45 = sadd.s32 %s44, 1
    %s46 = scalar_select %p43, %s44, %s45
    %p49 = pneg %p43
    %p50 = scmp.eq.s32.totalorder %s22, 3
    %p51 = por %p49, %p50
    %p52 = scmp.ne.s32.totalorder %s44, %s47
    %p53 = scmp.eq.s32.totalorder %s22, 0
    %p54 = por %p52, %p53
    %p55 = scmp.ne.s32.totalorder %s44, %s47
    %p56 = scmp.eq.s32.totalorder %s27, 3
    %p57 = por %p55, %p56
    %p58 = scmp.ne.s32.totalorder %s47, %s48
    %p59 = scmp.eq.s32.totalorder %s27, 0
    %p60 = por %p58, %p59
    %p61 = scmp.ne.s32.totalorder %s47, %s48
    %p62 = scmp.eq.s32.totalorder %s28, 3
    %p63 = por %p61, %p62
    %p65 = scmp.ne.s32.totalorder %s48, %s64
    %p66 = scmp.eq.s32.totalorder %s28, 0
    %p67 = por %p65, %p66
    %s68 = ssub.s32 %s29, %s41
    %p69 = scmp.eq.s32.totalorder %s68, 0
    %s71 = sadd.s32 %s70, 1
    %s72 = scalar_select %p69, %s70, %s71
    %p75 = pneg %p69
    %p76 = scmp.eq.s32.totalorder %s22, 3
    %p77 = por %p75, %p76
    %p78 = scmp.ne.s32.totalorder %s70, %s73
    %p79 = scmp.eq.s32.totalorder %s22, 0
    %p80 = por %p78, %p79
    %p81 = scmp.ne.s32.totalorder %s70, %s73
    %p82 = scmp.eq.s32.totalorder %s27, 3
    %p83 = por %p81, %p82
    %p84 = scmp.ne.s32.totalorder %s73, %s74
    %p85 = scmp.eq.s32.totalorder %s27, 0
    %p86 = por %p84, %p85
    %p87 = scmp.ne.s32.totalorder %s73, %s74
    %p88 = scmp.eq.s32.totalorder %s28, 3
    %p89 = por %p87, %p88
    %p91 = scmp.ne.s32.totalorder %s74, %s90
    %p92 = scmp.eq.s32.totalorder %s28, 0
    %p93 = por %p91, %p92
    %s95 = sadd.s32 %s94, 1
    %p98 = scmp.eq.s32.totalorder %s22, 3
    %p99 = scmp.ne.s32.totalorder %s94, %s96
    %p100 = scmp.eq.s32.totalorder %s22, 0
    %p101 = por %p99, %p100
    %p102 = scmp.ne.s32.totalorder %s94, %s96
    %p103 = scmp.eq.s32.totalorder %s27, 3
    %p104 = por %p102, %p103
    %p105 = scmp.ne.s32.totalorder %s96, %s97
    %p106 = scmp.eq.s32.totalorder %s27, 0
    %p107 = por %p105, %p106
    %p108 = scmp.ne.s32.totalorder %s96, %s97
    %p109 = scmp.eq.s32.totalorder %s28, 3
    %p110 = por %p108, %p109
    %p112 = scmp.ne.s32.totalorder %s97, %s111
    %p113 = scmp.eq.s32.totalorder %s28, 0
    %p114 = por %p112, %p113
    %s116 = sadd.s32 %s115, 1
    %p119 = scmp.eq.s32.totalorder %s22, 3
    %p120 = scmp.ne.s32.totalorder %s115, %s117
    %p121 = scmp.eq.s32.totalorder %s22, 0
    %p122 = por %p120, %p121
    %p123 = scmp.ne.s32.totalorder %s115, %s117
    %p124 = scmp.eq.s32.totalorder %s27, 3
    %p125 = por %p123, %p124
    %p126 = scmp.ne.s32.totalorder %s117, %s118
    %p127 = scmp.eq.s32.totalorder %s27, 0
    %p128 = por %p126, %p127
    %p129 = scmp.ne.s32.totalorder %s117, %s118
    %p130 = scmp.eq.s32.totalorder %s28, 3
    %p131 = por %p129, %p130
    %p133 = scmp.ne.s32.totalorder %s118, %s132
    %p134 = scmp.eq.s32.totalorder %s28, 0
    %p135 = por %p133, %p134
    %s136 = ssub.s32 %s30, %s37
    %p137 = scmp.eq.s32.totalorder %s136, 0
    %s139 = sadd.s32 %s138, 1
    %s140 = scalar_select %p137, %s138, %s139
    %p143 = pneg %p137
    %p144 = scmp.eq.s32.totalorder %s22, 3
    %p145 = por %p143, %p144
    %p146 = scmp.ne.s32.totalorder %s138, %s141
    %p147 = scmp.eq.s32.totalorder %s22, 0
    %p148 = por %p146, %p147
    %p149 = scmp.ne.s32.totalorder %s138, %s141
    %p150 = scmp.eq.s32.totalorder %s27, 3
    %p151 = por %p149, %p150
    %p152 = scmp.ne.s32.totalorder %s141, %s142
    %p153 = scmp.eq.s32.totalorder %s27, 0
    %p154 = por %p152, %p153
    %p155 = scmp.ne.s32.totalorder %s141, %s142
    %p156 = scmp.eq.s32.totalorder %s28, 3
    %p157 = por %p155, %p156
    %p159 = scmp.ne.s32.totalorder %s142, %s158
    %p160 = scmp.eq.s32.totalorder %s28, 0
    %p161 = por %p159, %p160
    %s162 = ssub.s32 %s30, %s37
    %p163 = scmp.eq.s32.totalorder %s162, 0
    %s165 = sadd.s32 %s164, 1
    %s166 = scalar_select %p163, %s164, %s165
    %p169 = pneg %p163
    %p170 = scmp.eq.s32.totalorder %s22, 3
    %p171 = por %p169, %p170
    %p172 = scmp.ne.s32.totalorder %s164, %s167
    %p173 = scmp.eq.s32.totalorder %s22, 0
    %p174 = por %p172, %p173
    %p175 = scmp.ne.s32.totalorder %s164, %s167
    %p176 = scmp.eq.s32.totalorder %s27, 3
    %p177 = por %p175, %p176
    %p178 = scmp.ne.s32.totalorder %s167, %s168
    %p179 = scmp.eq.s32.totalorder %s27, 0
    %p180 = por %p178, %p179
    %p181 = scmp.ne.s32.totalorder %s167, %s168
    %p182 = scmp.eq.s32.totalorder %s28, 3
    %p183 = por %p181, %p182
    %p185 = scmp.ne.s32.totalorder %s168, %s184
    %p186 = scmp.eq.s32.totalorder %s28, 0
    %p187 = por %p185, %p186
    %s188 = ssub.s32 %s30, %s37
    %p189 = scmp.eq.s32.totalorder %s188, 0
    %s191 = sadd.s32 %s190, 1
    %s192 = scalar_select %p189, %s190, %s191
    %p195 = pneg %p189
    %p196 = scmp.eq.s32.totalorder %s22, 3
    %p197 = por %p195, %p196
    %p198 = scmp.ne.s32.totalorder %s190, %s193
    %p199 = scmp.eq.s32.totalorder %s22, 0
    %p200 = por %p198, %p199
    %p201 = scmp.ne.s32.totalorder %s190, %s193
    %p202 = scmp.eq.s32.totalorder %s27, 3
    %p203 = por %p201, %p202
    %p204 = scmp.ne.s32.totalorder %s193, %s194
    %p205 = scmp.eq.s32.totalorder %s27, 0
    %p206 = por %p204, %p205
    %p207 = scmp.ne.s32.totalorder %s193, %s194
    %p208 = scmp.eq.s32.totalorder %s28, 3
    %p209 = por %p207, %p208
    %p211 = scmp.ne.s32.totalorder %s194, %s210
    %p212 = scmp.eq.s32.totalorder %s28, 0
    %p213 = por %p211, %p212
    %s214 = ssub.s32 %s30, %s37
    %p215 = scmp.eq.s32.totalorder %s214, 0
    %s217 = sadd.s32 %s216, 1
    %s218 = scalar_select %p215, %s216, %s217
    %p221 = pneg %p215
    %p222 = scmp.eq.s32.totalorder %s22, 3
    %p223 = por %p221, %p222
    %p224 = scmp.ne.s32.totalorder %s216, %s219
    %p225 = scmp.eq.s32.totalorder %s22, 0
    %p226 = por %p224, %p225
    %p227 = scmp.ne.s32.totalorder %s216, %s219
    %p228 = scmp.eq.s32.totalorder %s27, 3
    %p229 = por %p227, %p228
    %p230 = scmp.ne.s32.totalorder %s219, %s220
    %p231 = scmp.eq.s32.totalorder %s27, 0
    %p232 = por %p230, %p231
    %p233 = scmp.ne.s32.totalorder %s219, %s220
    %p234 = scmp.eq.s32.totalorder %s28, 3
    %p235 = por %p233, %p234
    %p237 = scmp.ne.s32.totalorder %s220, %s236
    %p238 = scmp.eq.s32.totalorder %s28, 0
    %p239 = por %p237, %p238
    %s240 = ssub.s32 %s30, %s37
    %p241 = scmp.eq.s32.totalorder %s240, 0
    %s243 = sadd.s32 %s242, 1
    %s244 = scalar_select %p241, %s242, %s243
    %p247 = pneg %p241
    %p248 = scmp.eq.s32.totalorder %s22, 3
    %p249 = por %p247, %p248
    %p250 = scmp.ne.s32.totalorder %s242, %s245
    %p251 = scmp.eq.s32.totalorder %s22, 0
    %p252 = por %p250, %p251
    %p253 = scmp.ne.s32.totalorder %s242, %s245
    %p254 = scmp.eq.s32.totalorder %s27, 3
    %p255 = por %p253, %p254
    %p256 = scmp.ne.s32.totalorder %s245, %s246
    %p257 = scmp.eq.s32.totalorder %s27, 0
    %p258 = por %p256, %p257
    %p259 = scmp.ne.s32.totalorder %s245, %s246
    %p260 = scmp.eq.s32.totalorder %s28, 3
    %p261 = por %p259, %p260
    %p263 = scmp.ne.s32.totalorder %s246, %s262
    %p264 = scmp.eq.s32.totalorder %s28, 0
    %p265 = por %p263, %p264
    %s266 = ssub.s32 %s30, %s37
    %p267 = scmp.eq.s32.totalorder %s266, 0
    %s269 = sadd.s32 %s268, 1
    %s270 = scalar_select %p267, %s268, %s269
    %p273 = pneg %p267
    %p274 = scmp.eq.s32.totalorder %s22, 3
    %p275 = por %p273, %p274
    %p276 = scmp.ne.s32.totalorder %s268, %s271
    %p277 = scmp.eq.s32.totalorder %s22, 0
    %p278 = por %p276, %p277
    %p279 = scmp.ne.s32.totalorder %s268, %s271
    %p280 = scmp.eq.s32.totalorder %s27, 3
    %p281 = por %p279, %p280
    %p282 = scmp.ne.s32.totalorder %s271, %s272
    %p283 = scmp.eq.s32.totalorder %s27, 0
    %p284 = por %p282, %p283
    %p285 = scmp.ne.s32.totalorder %s271, %s272
    %p286 = scmp.eq.s32.totalorder %s28, 3
    %p287 = por %p285, %p286
    %p289 = scmp.ne.s32.totalorder %s272, %s288
    %p290 = scmp.eq.s32.totalorder %s28, 0
    %p291 = por %p289, %p290
    %s292 = ssub.s32 %s30, %s37
    %p293 = scmp.eq.s32.totalorder %s292, 0
    %s295 = sadd.s32 %s294, 1
    %s296 = scalar_select %p293, %s294, %s295
    %p299 = pneg %p293
    %p300 = scmp.eq.s32.totalorder %s22, 3
    %p301 = por %p299, %p300
    %p302 = scmp.ne.s32.totalorder %s294, %s297
    %p303 = scmp.eq.s32.totalorder %s22, 0
    %p304 = por %p302, %p303
    %p305 = scmp.ne.s32.totalorder %s294, %s297
    %p306 = scmp.eq.s32.totalorder %s27, 3
    %p307 = por %p305, %p306
    %p308 = scmp.ne.s32.totalorder %s297, %s298
    %p309 = scmp.eq.s32.totalorder %s27, 0
    %p310 = por %p308, %p309
    %p311 = scmp.ne.s32.totalorder %s297, %s298
    %p312 = scmp.eq.s32.totalorder %s28, 3
    %p313 = por %p311, %p312
    %p315 = scmp.ne.s32.totalorder %s298, %s314
    %p316 = scmp.eq.s32.totalorder %s28, 0
    %p317 = por %p315, %p316
    %s318 = ssub.s32 %s30, %s37
    %p319 = scmp.eq.s32.totalorder %s318, 0
    %s321 = sadd.s32 %s320, 1
    %s322 = scalar_select %p319, %s320, %s321
    %p325 = pneg %p319
    %p326 = scmp.eq.s32.totalorder %s22, 3
    %p327 = por %p325, %p326
    %p328 = scmp.ne.s32.totalorder %s320, %s323
    %p329 = scmp.eq.s32.totalorder %s22, 0
    %p330 = por %p328, %p329
    %p331 = scmp.ne.s32.totalorder %s320, %s323
    %p332 = scmp.eq.s32.totalorder %s27, 3
    %p333 = por %p331, %p332
    %p334 = scmp.ne.s32.totalorder %s323, %s324
    %p335 = scmp.eq.s32.totalorder %s27, 0
    %p336 = por %p334, %p335
    %p337 = scmp.ne.s32.totalorder %s323, %s324
    %p338 = scmp.eq.s32.totalorder %s28, 3
    %p339 = por %p337, %p338
    %p341 = scmp.ne.s32.totalorder %s324, %s340
    %p342 = scmp.eq.s32.totalorder %s28, 0
    %p343 = por %p341, %p342
    %s344 = ssub.s32 %s30, %s37
    %p345 = scmp.eq.s32.totalorder %s344, 0
    %s347 = sadd.s32 %s346, 1
    %s348 = scalar_select %p345, %s346, %s347
    %p351 = pneg %p345
    %p352 = scmp.eq.s32.totalorder %s22, 3
    %p353 = por %p351, %p352
    %p354 = scmp.ne.s32.totalorder %s346, %s349
    %p355 = scmp.eq.s32.totalorder %s22, 0
    %p356 = por %p354, %p355
    %p357 = scmp.ne.s32.totalorder %s346, %s349
    %p358 = scmp.eq.s32.totalorder %s27, 3
    %p359 = por %p357, %p358
    %p360 = scmp.ne.s32.totalorder %s349, %s350
    %p361 = scmp.eq.s32.totalorder %s27, 0
    %p362 = por %p360, %p361
    %p363 = scmp.ne.s32.totalorder %s349, %s350
    %p364 = scmp.eq.s32.totalorder %s28, 3
    %p365 = por %p363, %p364
    %p367 = scmp.ne.s32.totalorder %s350, %s366
    %p368 = scmp.eq.s32.totalorder %s28, 0
    %p369 = por %p367, %p368
    %s370 = ssub.s32 %s30, %s37
    %p371 = scmp.eq.s32.totalorder %s370, 0
    %s373 = sadd.s32 %s372, 1
    %s374 = scalar_select %p371, %s372, %s373
    %p377 = pneg %p371
    %p378 = scmp.eq.s32.totalorder %s22, 3
    %p379 = por %p377, %p378
    %p380 = scmp.ne.s32.totalorder %s372, %s375
    %p381 = scmp.eq.s32.totalorder %s22, 0
    %p382 = por %p380, %p381
    %p383 = scmp.ne.s32.totalorder %s372, %s375
    %p384 = scmp.eq.s32.totalorder %s27, 3
    %p385 = por %p383, %p384
    %p386 = scmp.ne.s32.totalorder %s375, %s376
    %p387 = scmp.eq.s32.totalorder %s27, 0
    %p388 = por %p386, %p387
    %p389 = scmp.ne.s32.totalorder %s375, %s376
    %p390 = scmp.eq.s32.totalorder %s28, 3
    %p391 = por %p389, %p390
    %p393 = scmp.ne.s32.totalorder %s376, %s392
    %p394 = scmp.eq.s32.totalorder %s28, 0
    %p395 = por %p393, %p394
    %s396 = ssub.s32 %s30, %s37
    %p397 = scmp.eq.s32.totalorder %s396, 0
    %s399 = sadd.s32 %s398, 1
    %s400 = scalar_select %p397, %s398, %s399
    %p403 = pneg %p397
    %p404 = scmp.eq.s32.totalorder %s22, 3
    %p405 = por %p403, %p404
    %p406 = scmp.ne.s32.totalorder %s398, %s401
    %p407 = scmp.eq.s32.totalorder %s22, 0
    %p408 = por %p406, %p407
    %p409 = scmp.ne.s32.totalorder %s398, %s401
    %p410 = scmp.eq.s32.totalorder %s27, 3
    %p411 = por %p409, %p410
    %p412 = scmp.ne.s32.totalorder %s401, %s402
    %p413 = scmp.eq.s32.totalorder %s27, 0
    %p414 = por %p412, %p413
    %p415 = scmp.ne.s32.totalorder %s401, %s402
    %p416 = scmp.eq.s32.totalorder %s28, 3
    %p417 = por %p415, %p416
    %p419 = scmp.ne.s32.totalorder %s402, %s418
    %p420 = scmp.eq.s32.totalorder %s28, 0
    %p421 = por %p419, %p420
    %s422 = ssub.s32 %s30, %s37
    %p423 = scmp.eq.s32.totalorder %s422, 0
    %s425 = sadd.s32 %s424, 1
    %s426 = scalar_select %p423, %s424, %s425
    %p429 = pneg %p423
    %p430 = scmp.eq.s32.totalorder %s22, 3
    %p431 = por %p429, %p430
    %p432 = scmp.ne.s32.totalorder %s424, %s427
    %p433 = scmp.eq.s32.totalorder %s22, 0
    %p434 = por %p432, %p433
    %p435 = scmp.ne.s32.totalorder %s424, %s427
    %p436 = scmp.eq.s32.totalorder %s27, 3
    %p437 = por %p435, %p436
    %p438 = scmp.ne.s32.totalorder %s427, %s428
    %p439 = scmp.eq.s32.totalorder %s27, 0
    %p440 = por %p438, %p439
    %p441 = scmp.ne.s32.totalorder %s427, %s428
    %p442 = scmp.eq.s32.totalorder %s28, 3
    %p443 = por %p441, %p442
    %p445 = scmp.ne.s32.totalorder %s428, %s444
    %p446 = scmp.eq.s32.totalorder %s28, 0
    %p447 = por %p445, %p446
    %s448 = ssub.s32 %s29, %s41
    %p449 = scmp.eq.s32.totalorder %s448, 0
    %s451 = sadd.s32 %s450, 1
    %s452 = scalar_select %p449, %s450, %s451
    %p455 = pneg %p449
    %p456 = scmp.eq.s32.totalorder %s22, 3
    %p457 = por %p455, %p456
    %p458 = scmp.ne.s32.totalorder %s450, %s453
    %p459 = scmp.eq.s32.totalorder %s22, 0
    %p460 = por %p458, %p459
    %p461 = scmp.ne.s32.totalorder %s450, %s453
    %p462 = scmp.eq.s32.totalorder %s27, 3
    %p463 = por %p461, %p462
    %p464 = scmp.ne.s32.totalorder %s453, %s454
    %p465 = scmp.eq.s32.totalorder %s27, 0
    %p466 = por %p464, %p465
    %p467 = scmp.ne.s32.totalorder %s453, %s454
    %p468 = scmp.eq.s32.totalorder %s28, 3
    %p469 = por %p467, %p468
    %p471 = scmp.ne.s32.totalorder %s454, %s470
    %p472 = scmp.eq.s32.totalorder %s28, 0
    %p473 = por %p471, %p472
    %p474 = scmp.le.s32.totalorder 1, %s22
    %p475 = scmp.lt.s32.totalorder %s22, 5
    %p476 = pnand %p474, %p475
    %p477 = pneg %p476
    // Predicated region
    $region9: #{token_classifier_forward.2} parent=5 // pred_check
      _
    $region10: #{token_classifier_forward.2} parent=5 // pred_check_branch
      %479 = sbr.rel (%p476) target = $region12
    $region11: #{token_classifier_forward.2} parent=5 // pred_region
      %s480 = ssub.s32 %s22, 1
      // Predicated region
      $region13: #{token_classifier_forward.2} parent=11 // pred_check
        %p481 = pneg %p107
      $region14: #{token_classifier_forward.2} parent=11 // pred_check_branch
        %483 = sbr.rel (%p481) target = $region16
      $region15: #{token_classifier_forward.2} parent=11 // pred_region
        _
      $region16: #{token_classifier_forward.2} parent=11 // pred_fallthru
        _
      // Predicated region
      $region17: #{token_classifier_forward.2} parent=11 // pred_check
        %p484 = pneg %p128
      $region18: #{token_classifier_forward.2} parent=11 // pred_check_branch
        %486 = sbr.rel (%p484) target = $region20
      $region19: #{token_classifier_forward.2} parent=11 // pred_region
        _
      $region20: #{token_classifier_forward.2} parent=11 // pred_fallthru
        _
    $region12: #{token_classifier_forward.2} parent=5 // pred_fallthru
      _
    %p487 = scmp.lt.s32.totalorder %s22, 4
    // Predicated region
    $region21: #{token_classifier_forward.2} parent=5 // pred_check
      %p488 = pneg %p487
    $region22: #{token_classifier_forward.2} parent=5 // pred_check_branch
      %490 = sbr.rel (%p488) target = $region24
    $region23: #{token_classifier_forward.2} parent=5 // pred_region
      // Predicated region
      $region25: #{token_classifier_forward.2} parent=23 // pred_check
        %p491 = pneg %p54
      $region26: #{token_classifier_forward.2} parent=23 // pred_check_branch
        %493 = sbr.rel (%p491) target = $region28
      $region27: #{token_classifier_forward.2} parent=23 // pred_region
        %p494 = scmp.lt.s32.totalorder %s29, 1
        %s495 = scalar_select %p494, %s29, 1
        %s496 = smul.addr %s495, 8
        %s497 = scalar_lea.vmem %s0, %s496
      $region28: #{token_classifier_forward.2} parent=23 // pred_fallthru
        _
      // Predicated region
      $region29: #{token_classifier_forward.2} parent=23 // pred_check
        %p498 = pneg %p80
      $region30: #{token_classifier_forward.2} parent=23 // pred_check_branch
        %500 = sbr.rel (%p498) target = $region32
      $region31: #{token_classifier_forward.2} parent=23 // pred_region
        %p501 = scmp.lt.s32.totalorder %s29, 1
        %s502 = scalar_select %p501, %s29, 1
        %s503 = scalar_lea.vmem %s1, %s502
      $region32: #{token_classifier_forward.2} parent=23 // pred_fallthru
        _
      // Predicated region
      $region33: #{token_classifier_forward.2} parent=23 // pred_check
        %p504 = pneg %p148
      $region34: #{token_classifier_forward.2} parent=23 // pred_check_branch
        %506 = sbr.rel (%p504) target = $region36
      $region35: #{token_classifier_forward.2} parent=23 // pred_region
        %p507 = scmp.lt.s32.totalorder %s30, 1
        %s508 = scalar_select %p507, %s30, 1
        %s509 = smul.addr %s508, 4
        %s510 = smul.addr %s509, 4
        %s511 = scalar_lea.vmem %s4, %s510
      $region36: #{token_classifier_forward.2} parent=23 // pred_fallthru
        _
      // Predicated region
      $region37: #{token_classifier_forward.2} parent=23 // pred_check
        %p512 = pneg %p174
      $region38: #{token_classifier_forward.2} parent=23 // pred_check_branch
        %514 = sbr.rel (%p512) target = $region40
      $region39: #{token_classifier_forward.2} parent=23 // pred_region
        %p515 = scmp.lt.s32.totalorder %s30, 1
        %s516 = scalar_select %p515, %s30, 1
        %s517 = scalar_lea.vmem %s5, %s516
      $region40: #{token_classifier_forward.2} parent=23 // pred_fallthru
        _
      // Predicated region
      $region41: #{token_classifier_forward.2} parent=23 // pred_check
        %p518 = pneg %p200
      $region42: #{token_classifier_forward.2} parent=23 // pred_check_branch
        %520 = sbr.rel (%p518) target = $region44
      $region43: #{token_classifier_forward.2} parent=23 // pred_region
        %p521 = scmp.lt.s32.totalorder %s30, 1
        %s522 = scalar_select %p521, %s30, 1
        %s523 = smul.addr %s522, 4
        %s524 = smul.addr %s523, 4
        %s525 = scalar_lea.vmem %s6, %s524
      $region44: #{token_classifier_forward.2} parent=23 // pred_fallthru
        _
      // Predicated region
      $region45: #{token_classifier_forward.2} parent=23 // pred_check
        %p526 = pneg %p226
      $region46: #{token_classifier_forward.2} parent=23 // pred_check_branch
        %528 = sbr.rel (%p526) target = $region48
      $region47: #{token_classifier_forward.2} parent=23 // pred_region
        %p529 = scmp.lt.s32.totalorder %s30, 1
        %s530 = scalar_select %p529, %s30, 1
        %s531 = scalar_lea.vmem %s7, %s530
      $region48: #{token_classifier_forward.2} parent=23 // pred_fallthru
        _
      // Predicated region
      $region49: #{token_classifier_forward.2} parent=23 // pred_check
        %p532 = pneg %p252
      $region50: #{token_classifier_forward.2} parent=23 // pred_check_branch
        %534 = sbr.rel (%p532) target = $region52
      $region51: #{token_classifier_forward.2} parent=23 // pred_region
        %p535 = scmp.lt.s32.totalorder %s30, 1
        %s536 = scalar_select %p535, %s30, 1
        %s537 = scalar_lea.vmem %s8, %s536
      $region52: #{token_classifier_forward.2} parent=23 // pred_fallthru
        _
      // Predicated region
      $region53: #{token_classifier_forward.2} parent=23 // pred_check
        %p538 = pneg %p278
      $region54: #{token_classifier_forward.2} parent=23 // pred_check_branch
        %540 = sbr.rel (%p538) target = $region56
      $region55: #{token_classifier_forward.2} parent=23 // pred_region
        %p541 = scmp.lt.s32.totalorder %s30, 1
        %s542 = scalar_select %p541, %s30, 1
        %s543 = scalar_lea.vmem %s9, %s542
      $region56: #{token_classifier_forward.2} parent=23 // pred_fallthru
        _
      // Predicated region
      $region57: #{token_classifier_forward.2} parent=23 // pred_check
        %p544 = pneg %p304
      $region58: #{token_classifier_forward.2} parent=23 // pred_check_branch
        %546 = sbr.rel (%p544) target = $region60
      $region59: #{token_classifier_forward.2} parent=23 // pred_region
        %p547 = scmp.lt.s32.totalorder %s30, 1
        %s548 = scalar_select %p547, %s30, 1
        %s549 = smul.addr %s548, 4
        %s550 = smul.addr %s549, 4
        %s551 = scalar_lea.vmem %s10, %s550
      $region60: #{token_classifier_forward.2} parent=23 // pred_fallthru
        _
      // Predicated region
      $region61: #{token_classifier_forward.2} parent=23 // pred_check
        %p552 = pneg %p330
      $region62: #{token_classifier_forward.2} parent=23 // pred_check_branch
        %554 = sbr.rel (%p552) target = $region64
      $region63: #{token_classifier_forward.2} parent=23 // pred_region
        %p555 = scmp.lt.s32.totalorder %s30, 1
        %s556 = scalar_select %p555, %s30, 1
        %s557 = scalar_lea.vmem %s11, %s556
      $region64: #{token_classifier_forward.2} parent=23 // pred_fallthru
        _
      // Predicated region
      $region65: #{token_classifier_forward.2} parent=23 // pred_check
        %p558 = pneg %p356
      $region66: #{token_classifier_forward.2} parent=23 // pred_check_branch
        %560 = sbr.rel (%p558) target = $region68
      $region67: #{token_classifier_forward.2} parent=23 // pred_region
        %p561 = scmp.lt.s32.totalorder %s30, 1
        %s562 = scalar_select %p561, %s30, 1
        %s563 = smul.addr %s562, 8
        %s564 = smul.addr %s563, 4
        %s565 = scalar_lea.vmem %s12, %s564
      $region68: #{token_classifier_forward.2} parent=23 // pred_fallthru
        _
      // Predicated region
      $region69: #{token_classifier_forward.2} parent=23 // pred_check
        %p566 = pneg %p382
      $region70: #{token_classifier_forward.2} parent=23 // pred_check_branch
        %568 = sbr.rel (%p566) target = $region72
      $region71: #{token_classifier_forward.2} parent=23 // pred_region
        %p569 = scmp.lt.s32.totalorder %s30, 1
        %s570 = scalar_select %p569, %s30, 1
        %s571 = scalar_lea.vmem %s13, %s570
      $region72: #{token_classifier_forward.2} parent=23 // pred_fallthru
        _
      // Predicated region
      $region73: #{token_classifier_forward.2} parent=23 // pred_check
        %p572 = pneg %p408
      $region74: #{token_classifier_forward.2} parent=23 // pred_check_branch
        %574 = sbr.rel (%p572) target = $region76
      $region75: #{token_classifier_forward.2} parent=23 // pred_region
        %p575 = scmp.lt.s32.totalorder %s30, 1
        %s576 = scalar_select %p575, %s30, 1
        %s577 = scalar_lea.vmem %s14, %s576
      $region76: #{token_classifier_forward.2} parent=23 // pred_fallthru
        _
      // Predicated region
      $region77: #{token_classifier_forward.2} parent=23 // pred_check
        %p578 = pneg %p434
      $region78: #{token_classifier_forward.2} parent=23 // pred_check_branch
        %580 = sbr.rel (%p578) target = $region80
      $region79: #{token_classifier_forward.2} parent=23 // pred_region
        %p581 = scmp.lt.s32.totalorder %s30, 1
        %s582 = scalar_select %p581, %s30, 1
        %s583 = scalar_lea.vmem %s15, %s582
      $region80: #{token_classifier_forward.2} parent=23 // pred_fallthru
        _
    $region24: #{token_classifier_forward.2} parent=5 // pred_fallthru
      _
    %p584 = scmp.le.s32.totalorder 1, %s22
    %p585 = scmp.lt.s32.totalorder %s22, 5
    %p586 = pnand %p584, %p585
    %p587 = pneg %p586
    // Predicated region
    $region81: #{token_classifier_forward.2} parent=5 // pred_check
      _
    $region82: #{token_classifier_forward.2} parent=5 // pred_check_branch
      %589 = sbr.rel (%p586) target = $region84
    $region83: #{token_classifier_forward.2} parent=5 // pred_region
      %s590 = ssub.s32 %s22, 1
      %p591 = scmp.lt.s32.totalorder %s31, 1
      %s592 = scalar_select %p591, %s31, 1
      %s593 = smul.addr %s592, 8
      %s594 = scalar_lea.vmem %s0, %s593
      %p595 = pneg %p60
      %p596 = pneg %p57
      %p597 = scmp.lt.s32.totalorder %s31, 1
      %s598 = scalar_select %p597, %s31, 1
      %s599 = scalar_lea.vmem %s1, %s598
      %p600 = pneg %p86
      %p601 = pneg %p83
      %p602 = pneg %p107
      %p603 = pneg %p104
      %p604 = pneg %p128
      %p605 = pneg %p125
      %p606 = scmp.lt.s32.totalorder %s32, 1
      %s607 = scalar_select %p606, %s32, 1
      %s608 = smul.addr %s607, 4
      %s609 = smul.addr %s608, 4
      %s610 = scalar_lea.vmem %s4, %s609
      %p611 = pneg %p154
      %p612 = pneg %p151
      %p613 = scmp.lt.s32.totalorder %s32, 1
      %s614 = scalar_select %p613, %s32, 1
      %s615 = scalar_lea.vmem %s5, %s614
      %p616 = pneg %p180
      %p617 = pneg %p177
      %p618 = scmp.lt.s32.totalorder %s32, 1
      %s619 = scalar_select %p618, %s32, 1
      %s620 = smul.addr %s619, 4
      %s621 = smul.addr %s620, 4
      %s622 = scalar_lea.vmem %s6, %s621
      %p623 = pneg %p206
      %p624 = pneg %p203
      %p625 = scmp.lt.s32.totalorder %s32, 1
      %s626 = scalar_select %p625, %s32, 1
      %s627 = scalar_lea.vmem %s7, %s626
      %p628 = pneg %p232
      %p629 = pneg %p229
      %p630 = scmp.lt.s32.totalorder %s32, 1
      %s631 = scalar_select %p630, %s32, 1
      %s632 = scalar_lea.vmem %s8, %s631
      %p633 = pneg %p258
      %p634 = pneg %p255
      %p635 = scmp.lt.s32.totalorder %s32, 1
      %s636 = scalar_select %p635, %s32, 1
      %s637 = scalar_lea.vmem %s9, %s636
      %p638 = pneg %p284
      %p639 = pneg %p281
      %p640 = scmp.lt.s32.totalorder %s32, 1
      %s641 = scalar_select %p640, %s32, 1
      %s642 = smul.addr %s641, 4
      %s643 = smul.addr %s642, 4
      %s644 = scalar_lea.vmem %s10, %s643
      %p645 = pneg %p310
      %p646 = pneg %p307
      %p647 = scmp.lt.s32.totalorder %s32, 1
      %s648 = scalar_select %p647, %s32, 1
      %s649 = scalar_lea.vmem %s11, %s648
      %p650 = pneg %p336
      %p651 = pneg %p333
      %p652 = scmp.lt.s32.totalorder %s32, 1
      %s653 = scalar_select %p652, %s32, 1
      %s654 = smul.addr %s653, 8
      %s655 = smul.addr %s654, 4
      %s656 = scalar_lea.vmem %s12, %s655
      %p657 = pneg %p362
      %p658 = pneg %p359
      %p659 = scmp.lt.s32.totalorder %s32, 1
      %s660 = scalar_select %p659, %s32, 1
      %s661 = scalar_lea.vmem %s13, %s660
      %p662 = pneg %p388
      %p663 = pneg %p385
      %p664 = scmp.lt.s32.totalorder %s32, 1
      %s665 = scalar_select %p664, %s32, 1
      %s666 = scalar_lea.vmem %s14, %s665
      %p667 = pneg %p414
      %p668 = pneg %p411
      %p669 = scmp.lt.s32.totalorder %s32, 1
      %s670 = scalar_select %p669, %s32, 1
      %s671 = scalar_lea.vmem %s15, %s670
      %p672 = pneg %p440
      %p673 = pneg %p437
      %p674 = pneg %p466
      %p675 = pneg %p463
      %p676 = scmp.lt.s32.totalorder %s31, 1
      %s677 = scalar_select %p676, %s31, 1
      %s678 = smul.addr %s677, 8
      %s679 = scalar_lea.vmem %s16, %s678
      %p680 = scmp.lt.s32.totalorder %s31, 1
      %s681 = scalar_select %p680, %s31, 1
      %s682 = smul.addr %s681, 8
      %s683 = scalar_lea.vmem %s0, %s682
      %p684 = scmp.lt.s32.totalorder %s31, 1
      %s685 = scalar_select %p684, %s31, 1
      %s686 = scalar_lea.vmem %s1, %s685
      %p687 = scmp.lt.s32.totalorder %s32, 1
      %s688 = scalar_select %p687, %s32, 1
      %s689 = smul.addr %s688, 4
      %s690 = smul.addr %s689, 4
      %s691 = scalar_lea.vmem %s4, %s690
      %p692 = scmp.lt.s32.totalorder %s32, 1
      %s693 = scalar_select %p692, %s32, 1
      %s694 = scalar_lea.vmem %s5, %s693
      %p695 = scmp.lt.s32.totalorder %s32, 1
      %s696 = scalar_select %p695, %s32, 1
      %s697 = smul.addr %s696, 4
      %s698 = smul.addr %s697, 4
      %s699 = scalar_lea.vmem %s6, %s698
      %p700 = scmp.lt.s32.totalorder %s32, 1
      %s701 = scalar_select %p700, %s32, 1
      %s702 = scalar_lea.vmem %s7, %s701
      %p703 = scmp.lt.s32.totalorder %s32, 1
      %s704 = scalar_select %p703, %s32, 1
      %s705 = scalar_lea.vmem %s8, %s704
      %p706 = scmp.lt.s32.totalorder %s32, 1
      %s707 = scalar_select %p706, %s32, 1
      %s708 = scalar_lea.vmem %s9, %s707
      %p709 = scmp.lt.s32.totalorder %s32, 1
      %s710 = scalar_select %p709, %s32, 1
      %s711 = smul.addr %s710, 4
      %s712 = smul.addr %s711, 4
      %s713 = scalar_lea.vmem %s10, %s712
      %p714 = scmp.lt.s32.totalorder %s32, 1
      %s715 = scalar_select %p714, %s32, 1
      %s716 = scalar_lea.vmem %s11, %s715
      %p717 = scmp.lt.s32.totalorder %s32, 1
      %s718 = scalar_select %p717, %s32, 1
      %s719 = smul.addr %s718, 8
      %s720 = smul.addr %s719, 4
      %s721 = scalar_lea.vmem %s12, %s720
      %p722 = scmp.lt.s32.totalorder %s32, 1
      %s723 = scalar_select %p722, %s32, 1
      %s724 = scalar_lea.vmem %s13, %s723
      %p725 = scmp.lt.s32.totalorder %s32, 1
      %s726 = scalar_select %p725, %s32, 1
      %s727 = scalar_lea.vmem %s14, %s726
      %p728 = scmp.lt.s32.totalorder %s32, 1
      %s729 = scalar_select %p728, %s32, 1
      %s730 = scalar_lea.vmem %s15, %s729
      %p731 = scmp.lt.s32.totalorder %s31, 1
      %s732 = scalar_select %p731, %s31, 1
      %s733 = smul.addr %s732, 8
      %s734 = scalar_lea.vmem %s16, %s733
      %p736 = scmp.eq.s32.totalorder %s32, 0
      // Predicated region
      $region85: #{token_classifier_forward.2} parent=83 // pred_check
        %p737 = pneg %p736
      $region86: #{token_classifier_forward.2} parent=83 // pred_check_branch
        %739 = sbr.rel (%p737) target = $region88
      $region87: #{token_classifier_forward.2} parent=83 // pred_region
        %v740 = vld [vmem:[%s683] sm:$0xff]
        %v741 = vld [vmem:[%s2] sm:$0x1]
        %v742 = vld [vmem:[%s3] sm:$0x1]
        %vm743 = vcmask 261120
        %v744 = vsel %vm743, %v740, 0.0
        %745 = vadd.xlane.f32.xlu0 %v744
        %v746 = vpop.xlane.xlu0 %745
        %v747 = vrcp.pop 32.0
        %v748 = vmul.f32 %v746, %v747
        %v749 = vsub.f32 %v740, %v748
        %v750 = vmul.f32 %v749, %v749
        %v751 = vsel %vm743, %v750, 0.0
        %752 = vadd.xlane.f32.xlu0 %v751
        %v753 = vpop.xlane.xlu0 %752
        %v754 = vmul.f32 %v753, %v747
        %v755 = vadd.f32 %v754, 1e-12
        %v756 = vrsqrt.pop %v755
        %v757 = vmul.f32 %v749, %v756
        %v759 = vlaneseq
        %v760 = vshrl.u32 %v759, 7
        %v761 = vsub.s32 0, %v760
        %v762 = vrot.slane %v741, %v761
        %v764 = vmul.f32 %v757, %v762
        %v766 = vlaneseq
        %v767 = vshrl.u32 %v766, 7
        %v768 = vsub.s32 0, %v767
        %v769 = vrot.slane %v742, %v768
        %v771 = vadd.f32 %v764, %v769
        %772 = vst.msk [vmem:[#allocation2] sm:$0xff] %vm743, %v771
      $region88: #{token_classifier_forward.2} parent=83 // pred_fallthru
        _
      %v773 = vld [vmem:[#allocation2] sm:$0xff]
      %v774 = vld [vmem:[%s686] sm:$0x1]
      %v775 = vpack.c.bf16 %v773, %v773
      %v776 = vld [vmem:[%s691] sm:$0xf]
      %v777 = vld [vmem:[%s691 + $0x4] sm:$0xf]
      %v778 = vld [vmem:[%s691 + $0x8] sm:$0xf]
      %v779 = vld [vmem:[%s691 + $0xc] sm:$0xf]
      %v780 = vld [vmem:[%s694] sm:$0x1]
      %v782 = vlaneseq
      %v783 = vshrl.u32 %v782, 7
      %v784 = vsub.s32 0, %v783
      %v785 = vrot.slane %v780, %v784
      %v791 = vunpack.c.l.b16 %v776
      %v792 = vunpack.c.l.b16 %v777
      %v793 = vunpack.c.l.b16 %v778
      %v794 = vunpack.c.l.b16 %v779
      %v795 = vpack.c.b16 %v792, %v791
      %v796 = vpack.c.b16 %v794, %v793
      %vm799 = vcmask 261120
      %v801 = vsel %vm799, %v775, 0
      %803 = vmatprep.subr.bf16.mxu0 0
      %804 = vmatpush1.bf16.msra.mxu0 %v795
      %805 = vmatprep.subr.bf16.mxu0 0
      %806 = vmatpush1.bf16.msra.mxu0 %v796
      %807 = vmatprep.subr.bf16.mxu0 0
      %808 = vmatpush1.bf16.msra.mxu0 0
      %809 = vmatprep.subr.bf16.mxu0 0
      %810 = vmatpush1.bf16.msra.mxu0 0
      %811 = vmatprep.subr.bf16.mxu0 0
      %812 = vmatpush1.bf16.msra.mxu0 0
      %813 = vmatprep.subr.bf16.mxu0 0
      %814 = vmatpush1.bf16.msra.mxu0 0
      %815 = vmatprep.subr.bf16.mxu0 0
      %816 = vmatpush1.bf16.msra.mxu0 0
      %817 = vmatprep.subr.bf16.mxu0 0
      %818 = vmatpush1.bf16.msra.mxu0 0
      %819 = vmatprep.subr.bf16.mxu0 0
      %820 = vmatpush1.bf16.msra.mxu0 0
      %821 = vmatprep.subr.bf16.mxu0 0
      %822 = vmatpush1.bf16.msra.mxu0 0
      %823 = vmatprep.subr.bf16.mxu0 0
      %824 = vmatpush1.bf16.msra.mxu0 0
      %825 = vmatprep.subr.bf16.mxu0 0
      %826 = vmatpush1.bf16.msra.mxu0 0
      %827 = vmatprep.subr.bf16.mxu0 0
      %828 = vmatpush1.bf16.msra.mxu0 0
      %829 = vmatprep.subr.bf16.mxu0 0
      %830 = vmatpush1.bf16.msra.mxu0 0
      %831 = vmatprep.subr.bf16.mxu0 0
      %832 = vmatpush1.bf16.msra.mxu0 0
      %833 = vmatprep.subr.bf16.mxu0 0
      %834 = vmatpush1.bf16.msra.mxu0 0
      %835 = vmatprep.mubr.bf16.mxu0 0
      %836 = vmatmul.mubr.bf16.gmra.mrb[0].mxu0 %v801
      %v837 = vpop.f32.mrb[0].mxu0
      %v838 = vadd.f32 %v785, %v837
      %v839 = vpop.f32.mrb[0].mxu0
      %v840 = vpop.f32.mrb[0].mxu0
      %v841 = vpop.f32.mrb[0].mxu0
      %842 = vdwg.mxu0
      %v843 = vpack.c.bf16 %v838, %v838
      %v845 = vlaneseq
      %v846 = vshrl.u32 %v845, 7
      %v847 = vsub.s32 0, %v846
      %v848 = vrot.slane %v774, %v847
      %851 = vrot.lane.b32.xlu0 %v843, 96
      %v852 = vpop.permute.xlu0 %851
      %vm853 = vcmask 130048
      %v855 = vsel %vm853, %v843, 0
      %v858 = vsel %vm853, %v852, 0
      %860 = vmatprep.subr.bf16.mxu0 0
      %861 = vmatpush1.bf16.xpose.msra.mxu0 %v858
      %862 = vmatprep.subr.bf16.mxu0 0
      %863 = vmatpush1.bf16.xpose.msra.mxu0 0
      %864 = vmatprep.subr.bf16.mxu0 0
      %865 = vmatpush1.bf16.xpose.msra.mxu0 0
      %866 = vmatprep.subr.bf16.mxu0 0
      %867 = vmatpush1.bf16.xpose.msra.mxu0 0
      %868 = vmatprep.subr.bf16.mxu0 0
      %869 = vmatpush1.bf16.xpose.msra.mxu0 0
      %870 = vmatprep.subr.bf16.mxu0 0
      %871 = vmatpush1.bf16.xpose.msra.mxu0 0
      %872 = vmatprep.subr.bf16.mxu0 0
      %873 = vmatpush1.bf16.xpose.msra.mxu0 0
      %874 = vmatprep.subr.bf16.mxu0 0
      %875 = vmatpush1.bf16.xpose.msra.mxu0 0
      %876 = vmatprep.subr.bf16.mxu0 0
      %877 = vmatpush1.bf16.xpose.msra.mxu0 0
      %878 = vmatprep.subr.bf16.mxu0 0
      %879 = vmatpush1.bf16.xpose.msra.mxu0 0
      %880 = vmatprep.subr.bf16.mxu0 0
      %881 = vmatpush1.bf16.xpose.msra.mxu0 0
      %882 = vmatprep.subr.bf16.mxu0 0
      %883 = vmatpush1.bf16.xpose.msra.mxu0 0
      %884 = vmatprep.subr.bf16.mxu0 0
      %885 = vmatpush1.bf16.xpose.msra.mxu0 0
      %886 = vmatprep.subr.bf16.mxu0 0
      %887 = vmatpush1.bf16.xpose.msra.mxu0 0
      %888 = vmatprep.subr.bf16.mxu0 0
      %889 = vmatpush1.bf16.xpose.msra.mxu0 0
      %890 = vmatprep.subr.bf16.mxu0 0
      %891 = vmatpush1.bf16.xpose.msra.mxu0 0
      %892 = vmatprep.mubr.bf16.mxu0 0
      %893 = vmatmul.mubr.bf16.gmra.mrb[0].mxu0 %v855
      %v894 = vpop.f32.mrb[0].mxu0
      %v895 = vadd.f32 %v848, %v894
      %v896 = vpop.f32.mrb[0].mxu0
      %v897 = vpop.f32.mrb[0].mxu0
      %v898 = vpop.f32.mrb[0].mxu0
      %899 = vdwg.mxu0
      %vm900 = vcmask 64512
      %v901 = vsel %vm900, %v895, -inf
      %902 = vmax.xlane.f32.xlu0 %v901
      %v903 = vpop.xlane.xlu0 %902
      %v904 = vsub.f32 %v895, %v903
      %v905 = vmul.f32 %v904, 1.442695
      %v906 = vpow.pop %v905
      %v907 = vsel %vm900, %v906, 0.0
      %908 = vadd.xlane.f32.xlu0 %v907
      %v909 = vpop.xlane.xlu0 %908
      %v910 = vrcp.pop %v909
      %v911 = vmul.f32 %v906, %v910
      %v912 = vpack.c.bf16 %v911, %v911
      %913 = vrot.lane.b32.xlu0 %v843, 64
      %v914 = vpop.permute.xlu0 %913
      %v916 = vsel %vm900, %v912, 0
      %vm918 = vcmask 1043456
      %v920 = vsel %vm918, %v914, 0
      %922 = vmatprep.subr.bf16.mxu0 0
      %923 = vmatpush1.bf16.msra.mxu0 %v920
      %924 = vmatprep.subr.bf16.mxu0 0
      %925 = vmatpush1.bf16.msra.mxu0 0
      %926 = vmatprep.subr.bf16.mxu0 0
      %927 = vmatpush1.bf16.msra.mxu0 0
      %928 = vmatprep.subr.bf16.mxu0 0
      %929 = vmatpush1.bf16.msra.mxu0 0
      %930 = vmatprep.subr.bf16.mxu0 0
      %931 = vmatpush1.bf16.msra.mxu0 0
      %932 = vmatprep.subr.bf16.mxu0 0
      %933 = vmatpush1.bf16.msra.mxu0 0
      %934 = vmatprep.subr.bf16.mxu0 0
      %935 = vmatpush1.bf16.msra.mxu0 0
      %936 = vmatprep.subr.bf16.mxu0 0
      %937 = vmatpush1.bf16.msra.mxu0 0
      %938 = vmatprep.subr.bf16.mxu0 0
      %939 = vmatpush1.bf16.msra.mxu0 0
      %940 = vmatprep.subr.bf16.mxu0 0
      %941 = vmatpush1.bf16.msra.mxu0 0
      %942 = vmatprep.subr.bf16.mxu0 0
      %943 = vmatpush1.bf16.msra.mxu0 0
      %944 = vmatprep.subr.bf16.mxu0 0
      %945 = vmatpush1.bf16.msra.mxu0 0
      %946 = vmatprep.subr.bf16.mxu0 0
      %947 = vmatpush1.bf16.msra.mxu0 0
      %948 = vmatprep.subr.bf16.mxu0 0
      %949 = vmatpush1.bf16.msra.mxu0 0
      %950 = vmatprep.subr.bf16.mxu0 0
      %951 = vmatpush1.bf16.msra.mxu0 0
      %952 = vmatprep.subr.bf16.mxu0 0
      %953 = vmatpush1.bf16.msra.mxu0 0
      %954 = vmatprep.mubr.bf16.mxu0 0
      %955 = vmatmul.mubr.bf16.gmra.mrb[0].mxu0 %v916
      %v956 = vpop.f32.mrb[0].mxu0
      %v957 = vadd.f32 0.0, %v956
      %v958 = vpop.f32.mrb[0].mxu0
      %v959 = vpop.f32.mrb[0].mxu0
      %v960 = vpop.f32.mrb[0].mxu0
      %961 = vdwg.mxu0
      %962 = vst.msk [vmem:[#allocation3] sm:$0xff] %vm853, %v957
      %963 = vrot.lane.b32.xlu0 %v843, 112
      %v964 = vpop.permute.xlu0 %963
      %965 = vrot.lane.b32.xlu0 %v843, 80
      %v966 = vpop.permute.xlu0 %965
      %v968 = vsel %vm853, %v964, 0
      %v971 = vsel %vm853, %v966, 0
      %973 = vmatprep.subr.bf16.mxu0 0
      %974 = vmatpush1.bf16.xpose.msra.mxu0 %v971
      %975 = vmatprep.subr.bf16.mxu0 0
      %976 = vmatpush1.bf16.xpose.msra.mxu0 0
      %977 = vmatprep.subr.bf16.mxu0 0
      %978 = vmatpush1.bf16.xpose.msra.mxu0 0
      %979 = vmatprep.subr.bf16.mxu0 0
      %980 = vmatpush1.bf16.xpose.msra.mxu0 0
      %981 = vmatprep.subr.bf16.mxu0 0
      %982 = vmatpush1.bf16.xpose.msra.mxu0 0
      %983 = vmatprep.subr.bf16.mxu0 0
      %984 = vmatpush1.bf16.xpose.msra.mxu0 0
      %985 = vmatprep.subr.bf16.mxu0 0
      %986 = vmatpush1.bf16.xpose.msra.mxu0 0
      %987 = vmatprep.subr.bf16.mxu0 0
      %988 = vmatpush1.bf16.xpose.msra.mxu0 0
      %989 = vmatprep.subr.bf16.mxu0 0
      %990 = vmatpush1.bf16.xpose.msra.mxu0 0
      %991 = vmatprep.subr.bf16.mxu0 0
      %992 = vmatpush1.bf16.xpose.msra.mxu0 0
      %993 = vmatprep.subr.bf16.mxu0 0
      %994 = vmatpush1.bf16.xpose.msra.mxu0 0
      %995 = vmatprep.subr.bf16.mxu0 0
      %996 = vmatpush1.bf16.xpose.msra.mxu0 0
      %997 = vmatprep.subr.bf16.mxu0 0
      %998 = vmatpush1.bf16.xpose.msra.mxu0 0
      %999 = vmatprep.subr.bf16.mxu0 0
      %1000 = vmatpush1.bf16.xpose.msra.mxu0 0
      %1001 = vmatprep.subr.bf16.mxu0 0
      %1002 = vmatpush1.bf16.xpose.msra.mxu0 0
      %1003 = vmatprep.subr.bf16.mxu0 0
      %1004 = vmatpush1.bf16.xpose.msra.mxu0 0
      %1005 = vmatprep.mubr.bf16.mxu0 0
      %1006 = vmatmul.mubr.bf16.gmra.mrb[0].mxu0 %v968
      %v1007 = vpop.f32.mrb[0].mxu0
      %v1008 = vadd.f32 %v848, %v1007
      %v1009 = vpop.f32.mrb[0].mxu0
      %v1010 = vpop.f32.mrb[0].mxu0
      %v1011 = vpop.f32.mrb[0].mxu0
      %1012 = vdwg.mxu0
      %v1013 = vsel %vm900, %v1008, -inf
      %1014 = vmax.xlane.f32.xlu0 %v1013
      %v1015 = vpop.xlane.xlu0 %1014
      %v1016 = vsub.f32 %v1008, %v1015
      %v1017 = vmul.f32 %v1016, 1.442695
      %v1018 = vpow.pop %v1017
      %v1019 = vsel %vm900, %v1018, 0.0
      %1020 = vadd.xlane.f32.xlu0 %v1019
      %v1021 = vpop.xlane.xlu0 %1020
      %v1022 = vrcp.pop %v1021
      %v1023 = vmul.f32 %v1018, %v1022
      %v1024 = vpack.c.bf16 %v1023, %v1023
      %1025 = vrot.lane.b32.xlu0 %v843, 48
      %v1026 = vpop.permute.xlu0 %1025
      %v1028 = vsel %vm900, %v1024, 0
      %v1031 = vsel %vm918, %v1026, 0
      %1033 = vmatprep.subr.bf16.mxu0 0
      %1034 = vmatpush1.bf16.msra.mxu0 %v1031
      %1035 = vmatprep.subr.bf16.mxu0 0
      %1036 = vmatpush1.bf16.msra.mxu0 0
      %1037 = vmatprep.subr.bf16.mxu0 0
      %1038 = vmatpush1.bf16.msra.mxu0 0
      %1039 = vmatprep.subr.bf16.mxu0 0
      %1040 = vmatpush1.bf16.msra.mxu0 0
      %1041 = vmatprep.subr.bf16.mxu0 0
      %1042 = vmatpush1.bf16.msra.mxu0 0
      %1043 = vmatprep.subr.bf16.mxu0 0
      %1044 = vmatpush1.bf16.msra.mxu0 0
      %1045 = vmatprep.subr.bf16.mxu0 0
      %1046 = vmatpush1.bf16.msra.mxu0 0
      %1047 = vmatprep.subr.bf16.mxu0 0
      %1048 = vmatpush1.bf16.msra.mxu0 0
      %1049 = vmatprep.subr.bf16.mxu0 0
      %1050 = vmatpush1.bf16.msra.mxu0 0
      %1051 = vmatprep.subr.bf16.mxu0 0
      %1052 = vmatpush1.bf16.msra.mxu0 0
      %1053 = vmatprep.subr.bf16.mxu0 0
      %1054 = vmatpush1.bf16.msra.mxu0 0
      %1055 = vmatprep.subr.bf16.mxu0 0
      %1056 = vmatpush1.bf16.msra.mxu0 0
      %1057 = vmatprep.subr.bf16.mxu0 0
      %1058 = vmatpush1.bf16.msra.mxu0 0
      %1059 = vmatprep.subr.bf16.mxu0 0
      %1060 = vmatpush1.bf16.msra.mxu0 0
      %1061 = vmatprep.subr.bf16.mxu0 0
      %1062 = vmatpush1.bf16.msra.mxu0 0
      %1063 = vmatprep.subr.bf16.mxu0 0
      %1064 = vmatpush1.bf16.msra.mxu0 0
      %1065 = vmatprep.mubr.bf16.mxu0 0
      %1066 = vmatmul.mubr.bf16.gmra.mrb[0].mxu0 %v1028
      %v1067 = vpop.f32.mrb[0].mxu0
      %v1068 = vadd.f32 0.0, %v1067
      %v1069 = vpop.f32.mrb[0].mxu0
      %v1070 = vpop.f32.mrb[0].mxu0
      %v1071 = vpop.f32.mrb[0].mxu0
      %1072 = vdwg.mxu0
      %1074 = vrot.lane.b32.xlu0 %v1068, 16
      %v1075 = vpop.permute.xlu0 %1074
      %vm1077 = vcmask 261248
      %1078 = vst.msk [vmem:[#allocation3] sm:$0xff] %vm1077, %v1075
      %v1079 = vld [vmem:[#allocation3] sm:$0xff]
      %v1080 = vpack.c.bf16 %v1079, %v1079
      %v1081 = vld [vmem:[%s699] sm:$0xf]
      %v1082 = vld [vmem:[%s699 + $0x4] sm:$0xf]
      %v1083 = vld [vmem:[%s699 + $0x8] sm:$0xf]
      %v1084 = vld [vmem:[%s699 + $0xc] sm:$0xf]
      %v1085 = vld [vmem:[%s702] sm:$0x1]
      %v1087 = vlaneseq
      %v1088 = vshrl.u32 %v1087, 7
      %v1089 = vsub.s32 0, %v1088
      %v1090 = vrot.slane %v1085, %v1089
      %v1096 = vunpack.c.l.b16 %v1081
      %v1097 = vunpack.c.l.b16 %v1082
      %v1098 = vunpack.c.l.b16 %v1083
      %v1099 = vunpack.c.l.b16 %v1084
      %v1100 = vpack.c.b16 %v1097, %v1096
      %v1101 = vpack.c.b16 %v1099, %v1098
      %v1105 = vsel %vm799, %v1080, 0
      %1107 = vmatprep.subr.bf16.mxu0 0
      %1108 = vmatpush1.bf16.msra.mxu0 %v1100
      %1109 = vmatprep.subr.bf16.mxu0 0
      %1110 = vmatpush1.bf16.msra.mxu0 %v1101
      %1111 = vmatprep.subr.bf16.mxu0 0
      %1112 = vmatpush1.bf16.msra.mxu0 0
      %1113 = vmatprep.subr.bf16.mxu0 0
      %1114 = vmatpush1.bf16.msra.mxu0 0
      %1115 = vmatprep.subr.bf16.mxu0 0
      %1116 = vmatpush1.bf16.msra.mxu0 0
      %1117 = vmatprep.subr.bf16.mxu0 0
      %1118 = vmatpush1.bf16.msra.mxu0 0
      %1119 = vmatprep.subr.bf16.mxu0 0
      %1120 = vmatpush1.bf16.msra.mxu0 0
      %1121 = vmatprep.subr.bf16.mxu0 0
      %1122 = vmatpush1.bf16.msra.mxu0 0
      %1123 = vmatprep.subr.bf16.mxu0 0
      %1124 = vmatpush1.bf16.msra.mxu0 0
      %1125 = vmatprep.subr.bf16.mxu0 0
      %1126 = vmatpush1.bf16.msra.mxu0 0
      %1127 = vmatprep.subr.bf16.mxu0 0
      %1128 = vmatpush1.bf16.msra.mxu0 0
      %1129 = vmatprep.subr.bf16.mxu0 0
      %1130 = vmatpush1.bf16.msra.mxu0 0
      %1131 = vmatprep.subr.bf16.mxu0 0
      %1132 = vmatpush1.bf16.msra.mxu0 0
      %1133 = vmatprep.subr.bf16.mxu0 0
      %1134 = vmatpush1.bf16.msra.mxu0 0
      %1135 = vmatprep.subr.bf16.mxu0 0
      %1136 = vmatpush1.bf16.msra.mxu0 0
      %1137 = vmatprep.subr.bf16.mxu0 0
      %1138 = vmatpush1.bf16.msra.mxu0 0
      %1139 = vmatprep.mubr.bf16.mxu0 0
      %1140 = vmatmul.mubr.bf16.gmra.mrb[0].mxu0 %v1105
      %v1141 = vpop.f32.mrb[0].mxu0
      %v1142 = vadd.f32 %v1090, %v1141
      %v1143 = vpop.f32.mrb[0].mxu0
      %v1144 = vpop.f32.mrb[0].mxu0
      %v1145 = vpop.f32.mrb[0].mxu0
      %1146 = vdwg.mxu0
      %v1147 = vadd.f32 %v1142, %v773
      %v1148 = vld [vmem:[%s705] sm:$0x1]
      %v1149 = vld [vmem:[%s708] sm:$0x1]
      %v1150 = vsel %vm799, %v1147, 0.0
      %1151 = vadd.xlane.f32.xlu0 %v1150
      %v1152 = vpop.xlane.xlu0 %1151
      %v1153 = vrcp.pop 32.0
      %v1154 = vmul.f32 %v1152, %v1153
      %v1155 = vsub.f32 %v1147, %v1154
      %v1156 = vmul.f32 %v1155, %v1155
      %v1157 = vsel %vm799, %v1156, 0.0
      %1158 = vadd.xlane.f32.xlu0 %v1157
      %v1159 = vpop.xlane.xlu0 %1158
      %v1160 = vmul.f32 %v1159, %v1153
      %v1161 = vadd.f32 %v1160, 1e-12
      %v1162 = vrsqrt.pop %v1161
      %v1163 = vmul.f32 %v1155, %v1162
      %v1165 = vlaneseq
      %v1166 = vshrl.u32 %v1165, 7
      %v1167 = vsub.s32 0, %v1166
      %v1168 = vrot.slane %v1148, %v1167
      %v1170 = vmul.f32 %v1163, %v1168
      %v1172 = vlaneseq
      %v1173 = vshrl.u32 %v1172, 7
      %v1174 = vsub.s32 0, %v1173
      %v1175 = vrot.slane %v1149, %v1174
      %v1177 = vadd.f32 %v1170, %v1175
      %v1178 = vpack.c.bf16 %v1177, %v1177
      %v1179 = vld [vmem:[%s713] sm:$0xf]
      %v1180 = vld [vmem:[%s713 + $0x4] sm:$0xf]
      %v1181 = vld [vmem:[%s713 + $0x8] sm:$0xf]
      %v1182 = vld [vmem:[%s713 + $0xc] sm:$0xf]
      %v1183 = vld [vmem:[%s716] sm:$0x1]
      %v1185 = vlaneseq
      %v1186 = vshrl.u32 %v1185, 7
      %v1187 = vsub.s32 0, %v1186
      %v1188 = vrot.slane %v1183, %v1187
      %v1194 = vunpack.c.l.b16 %v1179
      %v1195 = vunpack.c.l.b16 %v1180
      %v1196 = vunpack.c.l.b16 %v1181
      %v1197 = vunpack.c.l.b16 %v1182
      %v1198 = vpack.c.b16 %v1195, %v1194
      %v1199 = vpack.c.b16 %v1197, %v1196
      %v1203 = vsel %vm799, %v1178, 0
      %1205 = vmatprep.subr.bf16.mxu0 0
      %1206 = vmatpush1.bf16.msra.mxu0 %v1198
      %1207 = vmatprep.subr.bf16.mxu0 0
      %1208 = vmatpush1.bf16.msra.mxu0 %v1199
      %1209 = vmatprep.subr.bf16.mxu0 0
      %1210 = vmatpush1.bf16.msra.mxu0 0
      %1211 = vmatprep.subr.bf16.mxu0 0
      %1212 = vmatpush1.bf16.msra.mxu0 0
      %1213 = vmatprep.subr.bf16.mxu0 0
      %1214 = vmatpush1.bf16.msra.mxu0 0
      %1215 = vmatprep.subr.bf16.mxu0 0
      %1216 = vmatpush1.bf16.msra.mxu0 0
      %1217 = vmatprep.subr.bf16.mxu0 0
      %1218 = vmatpush1.bf16.msra.mxu0 0
      %1219 = vmatprep.subr.bf16.mxu0 0
      %1220 = vmatpush1.bf16.msra.mxu0 0
      %1221 = vmatprep.subr.bf16.mxu0 0
      %1222 = vmatpush1.bf16.msra.mxu0 0
      %1223 = vmatprep.subr.bf16.mxu0 0
      %1224 = vmatpush1.bf16.msra.mxu0 0
      %1225 = vmatprep.subr.bf16.mxu0 0
      %1226 = vmatpush1.bf16.msra.mxu0 0
      %1227 = vmatprep.subr.bf16.mxu0 0
      %1228 = vmatpush1.bf16.msra.mxu0 0
      %1229 = vmatprep.subr.bf16.mxu0 0
      %1230 = vmatpush1.bf16.msra.mxu0 0
      %1231 = vmatprep.subr.bf16.mxu0 0
      %1232 = vmatpush1.bf16.msra.mxu0 0
      %1233 = vmatprep.subr.bf16.mxu0 0
      %1234 = vmatpush1.bf16.msra.mxu0 0
      %1235 = vmatprep.subr.bf16.mxu0 0
      %1236 = vmatpush1.bf16.msra.mxu0 0
      %1237 = vmatprep.mubr.bf16.mxu0 0
      %1238 = vmatmul.mubr.bf16.gmra.mrb[0].mxu0 %v1203
      %v1239 = vpop.f32.mrb[0].mxu0
      %v1240 = vadd.f32 %v1188, %v1239
      %v1241 = vpop.f32.mrb[0].mxu0
      %v1242 = vpop.f32.mrb[0].mxu0
      %v1243 = vpop.f32.mrb[0].mxu0
      %1244 = vdwg.mxu0
      %v1245 = vmul.f32 %v1240, 0.5
      %v1246 = vmul.f32 %v1240, 0.70710677
      %v1247 = verf.f32.pop %v1246
      %v1248 = vadd.f32 %v1247, 1.0
      %v1249 = vmul.f32 %v1245, %v1248
      %v1250 = vpack.c.bf16 %v1249, %v1249
      %v1251 = vld [vmem:[%s721] sm:$0xf]
      %v1252 = vld [vmem:[%s721 + $0x4] sm:$0xf]
      %v1253 = vld [vmem:[%s721 + $0x8] sm:$0xf]
      %v1254 = vld [vmem:[%s721 + $0xc] sm:$0xf]
      %v1255 = vld [vmem:[%s721 + $0x10] sm:$0xf]
      %v1256 = vld [vmem:[%s721 + $0x14] sm:$0xf]
      %v1257 = vld [vmem:[%s721 + $0x18] sm:$0xf]
      %v1258 = vld [vmem:[%s721 + $0x1c] sm:$0xf]
      %v1259 = vld [vmem:[%s724] sm:$0x1]
      %v1261 = vlaneseq
      %v1262 = vshrl.u32 %v1261, 7
      %v1263 = vsub.s32 0, %v1262
      %v1264 = vrot.slane %v1259, %v1263
      %v1274 = vunpack.c.l.b16 %v1251
      %v1275 = vunpack.c.l.b16 %v1252
      %v1276 = vunpack.c.l.b16 %v1253
      %v1277 = vunpack.c.l.b16 %v1254
      %v1278 = vunpack.c.l.b16 %v1255
      %v1279 = vunpack.c.l.b16 %v1256
      %v1280 = vunpack.c.l.b16 %v1257
      %v1281 = vunpack.c.l.b16 %v1258
      %v1282 = vpack.c.b16 %v1275, %v1274
      %v1283 = vpack.c.b16 %v1277, %v1276
      %v1284 = vpack.c.b16 %v1279, %v1278
      %v1285 = vpack.c.b16 %v1281, %v1280
      %vm1290 = vcmask 523264
      %v1292 = vsel %vm1290, %v1250, 0
      %1294 = vmatprep.subr.bf16.mxu0 0
      %1295 = vmatpush1.bf16.msra.mxu0 %v1282
      %1296 = vmatprep.subr.bf16.mxu0 0
      %1297 = vmatpush1.bf16.msra.mxu0 %v1283
      %1298 = vmatprep.subr.bf16.mxu0 0
      %1299 = vmatpush1.bf16.msra.mxu0 %v1284
      %1300 = vmatprep.subr.bf16.mxu0 0
      %1301 = vmatpush1.bf16.msra.mxu0 %v1285
      %1302 = vmatprep.subr.bf16.mxu0 0
      %1303 = vmatpush1.bf16.msra.mxu0 0
      %1304 = vmatprep.subr.bf16.mxu0 0
      %1305 = vmatpush1.bf16.msra.mxu0 0
      %1306 = vmatprep.subr.bf16.mxu0 0
      %1307 = vmatpush1.bf16.msra.mxu0 0
      %1308 = vmatprep.subr.bf16.mxu0 0
      %1309 = vmatpush1.bf16.msra.mxu0 0
      %1310 = vmatprep.subr.bf16.mxu0 0
      %1311 = vmatpush1.bf16.msra.mxu0 0
      %1312 = vmatprep.subr.bf16.mxu0 0
      %1313 = vmatpush1.bf16.msra.mxu0 0
      %1314 = vmatprep.subr.bf16.mxu0 0
      %1315 = vmatpush1.bf16.msra.mxu0 0
      %1316 = vmatprep.subr.bf16.mxu0 0
      %1317 = vmatpush1.bf16.msra.mxu0 0
      %1318 = vmatprep.subr.bf16.mxu0 0
      %1319 = vmatpush1.bf16.msra.mxu0 0
      %1320 = vmatprep.subr.bf16.mxu0 0
      %1321 = vmatpush1.bf16.msra.mxu0 0
      %1322 = vmatprep.subr.bf16.mxu0 0
      %1323 = vmatpush1.bf16.msra.mxu0 0
      %1324 = vmatprep.subr.bf16.mxu0 0
      %1325 = vmatpush1.bf16.msra.mxu0 0
      %1326 = vmatprep.mubr.bf16.mxu0 0
      %1327 = vmatmul.mubr.bf16.gmra.mrb[0].mxu0 %v1292
      %v1328 = vpop.f32.mrb[0].mxu0
      %v1329 = vadd.f32 %v1264, %v1328
      %v1330 = vpop.f32.mrb[0].mxu0
      %v1331 = vpop.f32.mrb[0].mxu0
      %v1332 = vpop.f32.mrb[0].mxu0
      %1333 = vdwg.mxu0
      %v1334 = vadd.f32 %v1329, %v1177
      %v1335 = vld [vmem:[%s727] sm:$0x1]
      %v1336 = vld [vmem:[%s730] sm:$0x1]
      %v1337 = vsel %vm799, %v1334, 0.0
      %1338 = vadd.xlane.f32.xlu0 %v1337
      %v1339 = vpop.xlane.xlu0 %1338
      %v1340 = vmul.f32 %v1339, %v1153
      %v1341 = vsub.f32 %v1334, %v1340
      %v1342 = vmul.f32 %v1341, %v1341
      %v1343 = vsel %vm799, %v1342, 0.0
      %1344 = vadd.xlane.f32.xlu0 %v1343
      %v1345 = vpop.xlane.xlu0 %1344
      %v1346 = vmul.f32 %v1345, %v1153
      %v1347 = vadd.f32 %v1346, 1e-12
      %v1348 = vrsqrt.pop %v1347
      %v1349 = vmul.f32 %v1341, %v1348
      %v1351 = vlaneseq
      %v1352 = vshrl.u32 %v1351, 7
      %v1353 = vsub.s32 0, %v1352
      %v1354 = vrot.slane %v1335, %v1353
      %v1356 = vmul.f32 %v1349, %v1354
      %v1358 = vlaneseq
      %v1359 = vshrl.u32 %v1358, 7
      %v1360 = vsub.s32 0, %v1359
      %v1361 = vrot.slane %v1336, %v1360
      %v1363 = vadd.f32 %v1356, %v1361
      %1364 = vst.msk [vmem:[#allocation2] sm:$0xff] %vm799, %v1363
      %1365 = vst.msk [vmem:[%s734] sm:$0xff] %vm799, %v1363
      %p1366 = scmp.lt.s32.totalorder %s31, 1
      %s1367 = scalar_select %p1366, %s31, 1
      %s1368 = smul.addr %s1367, 8
      %s1369 = scalar_lea.vmem %s16, %s1368
      // Predicated region
      $region89: #{token_classifier_forward.2} parent=83 // pred_check
        %p1370 = pneg %p463
      $region90: #{token_classifier_forward.2} parent=83 // pred_check_branch
        %1372 = sbr.rel (%p1370) target = $region92
      $region91: #{token_classifier_forward.2} parent=83 // pred_region
        _
      $region92: #{token_classifier_forward.2} parent=83 // pred_fallthru
        _
    $region84: #{token_classifier_forward.2} parent=5 // pred_fallthru
      _
    %p1373 = scmp.le.s32.totalorder 2, %s22
    // Predicated region
    $region93: #{token_classifier_forward.2} parent=5 // pred_check
      %p1374 = pneg %p1373
    $region94: #{token_classifier_forward.2} parent=5 // pred_check_branch
      %1376 = sbr.rel (%p1374) target = $region96
    $region95: #{token_classifier_forward.2} parent=5 // pred_region
      %s1377 = ssub.s32 %s22, 2
      // Predicated region
      $region97: #{token_classifier_forward.2} parent=95 // pred_check
        %p1378 = pneg %p469
      $region98: #{token_classifier_forward.2} parent=95 // pred_check_branch
        %1380 = sbr.rel (%p1378) target = $region100
      $region99: #{token_classifier_forward.2} parent=95 // pred_region
        %p1381 = scmp.lt.s32.totalorder %s33, 1
        %s1382 = scalar_select %p1381, %s33, 1
        %s1383 = smul.addr %s1382, 8
        %s1384 = scalar_lea.vmem %s16, %s1383
      $region100: #{token_classifier_forward.2} parent=95 // pred_fallthru
        _
    $region96: #{token_classifier_forward.2} parent=5 // pred_fallthru
      _
  $region6: #{token_classifier_forward.2} parent=0 // loop_footer
    %s26 = sadd.s32 1, %s22
  $region7: #{token_classifier_forward.2} parent=0 // loop_footer_branch
    %21 = sbr.rel target = $region3
  $region8: #{token_classifier_forward.2} parent=0 // loop_exit
    _

</llo_original>
